<compile_context>
chip_gen: v7x
topology: tpu7x:2x2x1
jax: 0.10.0
libtpu: 0.0.40
codegen_flags: <defaults>
</compile_context>

<pallas_src>
import functools

import jax
import jax.numpy as jnp
from jax.experimental import pallas as pl
from jax.experimental.pallas import tpu as pltpu


def _gelu_tanh(h, dtype):
    # h arrives in f32 (post-bias).  The tanh-GELU polynomial can optionally run
    # in bf16 on v6e/v7x (bf16 VPU/EUP) to halve VALU/vreg pressure; keep f32 on
    # v5e.  Matches torch GELU(tanh approx) exactly when dtype == f32.
    hd = h.astype(dtype)
    c = jnp.asarray(0.7978845608028654, dtype)      # sqrt(2/pi)
    k = jnp.asarray(0.044715, dtype)
    half = jnp.asarray(0.5, dtype)
    one = jnp.asarray(1.0, dtype)
    return half * hd * (one + jnp.tanh(c * (hd + k * (hd * hd * hd))))


# ----------------------------------------------------------------------------
# Kernel A: weights resident in VMEM, 1-D grid over row tiles only.
# ----------------------------------------------------------------------------
def _ffn_kernel_resident(x_ref, w1_ref, b1_ref, w2_ref, b2_ref, o_ref, *,
                         gelu_dtype):
    h = jnp.dot(x_ref[...], w1_ref[...], preferred_element_type=jnp.float32)
    h = h + b1_ref[...]
    g = _gelu_tanh(h, gelu_dtype)
    out = jnp.dot(g.astype(w2_ref.dtype), w2_ref[...],
                  preferred_element_type=jnp.float32)
    o_ref[...] = (out + b2_ref[...]).astype(o_ref.dtype)


# ----------------------------------------------------------------------------
# Kernel B: hidden dimension streamed as the last ("arbitrary") grid axis with
# a (tm, emb) f32 accumulator — used when weights don't fit the VMEM budget.
# ----------------------------------------------------------------------------
def _ffn_kernel_reduce(x_ref, w1_ref, b1_ref, w2_ref, b2_ref, o_ref, acc_ref, *,
                       gelu_dtype):
    j = pl.program_id(1)

    @pl.when(j == 0)
    def _():
        acc_ref[...] = jnp.zeros_like(acc_ref)

    h = jnp.dot(x_ref[...], w1_ref[...], preferred_element_type=jnp.float32)
    h = h + b1_ref[...]
    g = _gelu_tanh(h, gelu_dtype)
    acc_ref[...] += jnp.dot(g.astype(w2_ref.dtype), w2_ref[...],
                            preferred_element_type=jnp.float32)

    @pl.when(j == pl.num_programs(1) - 1)
    def _():
        o_ref[...] = (acc_ref[...] + b2_ref[...]).astype(o_ref.dtype)


# ----------------------------------------------------------------------------
# Tile / VMEM arithmetic helpers.
# ----------------------------------------------------------------------------
def _pick_hidden_tile(hidden, target, align):
    """Largest multiple of `align` that divides `hidden` and is <= target."""
    t = min(target, hidden)
    t = (t // align) * align
    while t >= align:
        if hidden % t == 0:
            return t
        t -= align
    return hidden  # hidden < align: fall back to untiled hidden


def _resident_vmem_bytes(tm, emb, hidden, cb, ob, wbuf):
    b = 0
    b += 2 * tm * emb * cb          # x tile (double-buffered)
    b += wbuf * emb * hidden * cb   # W1 (resident)
    b += wbuf * hidden * 4          # b1
    b += wbuf * hidden * emb * cb   # W2 (resident)
    b += wbuf * emb * 4             # b2
    b += 2 * tm * emb * ob          # output tile
    b += tm * hidden * (4 + 2)      # h (f32) + GELU intermediate
    b += 4 << 20                    # compiler-internal scratch headroom
    return b


def _reduce_vmem_bytes(tm, th, emb, cb, ob):
    b = 0
    b += 2 * tm * emb * cb          # x tile
    b += 2 * emb * th * cb          # W1 slab
    b += 2 * th * 4                 # b1 slab
    b += 2 * th * emb * cb          # W2 slab
    b += 2 * emb * 4                # b2
    b += 2 * tm * emb * ob          # output tile
    b += tm * emb * 4               # f32 accumulator scratch
    b += tm * th * (4 + 2)          # h (f32) + GELU intermediate
    b += 4 << 20                    # headroom
    return b


# ----------------------------------------------------------------------------
# Wrapper.
# ----------------------------------------------------------------------------
def feed_forward(x, w1, b1, w2, b2, *, tm=512, th=1024,
                 compute_dtype=jnp.bfloat16, gelu_dtype=jnp.float32,
                 out_dtype=None, vmem_budget_bytes=48 << 20,
                 force_reduction=False, core_parallel=False,
                 single_buffer_resident_weights=False):
    """GPT-2 MLP forward.

    x: (batch, seq, emb). w1: (emb, hidden). b1: (hidden,).
    w2: (hidden, emb).    b2: (emb,).

    tm: row tile. 512 keeps the streaming path MXU-bound on v6e/v7x (>= peak
        TFLOPs / HBM BW); 256-512 is fine on v5e.
    th: hidden reduction tile (streaming path), 256-aligned when possible.
    compute_dtype: MXU input dtype (bf16). Pass weights already stored in this
        dtype to avoid a per-call cast pass over them.
    gelu_dtype: f32 (default, all chips) or bf16 (v6e/v7x only).
    vmem_budget_bytes: usable VMEM budget. 48 MiB is v7x-safe (64 MiB phys);
        raise to ~100 MiB on v5e/v6e to keep larger weights resident.
    core_parallel: use pltpu.CORE_PARALLEL on the row axis (v7x, 2 TCs/chip).
    single_buffer_resident_weights: pl.Buffered(1) on resident weight specs to
        avoid double-buffering them (saves VMEM on v7x).
    """
    batch, seq, emb = x.shape
    hidden = w1.shape[1]
    M = batch * seq

    cdt = jnp.dtype(compute_dtype)
    out_dtype = jnp.dtype(x.dtype if out_dtype is None else out_dtype)
    cb, ob = cdt.itemsize, out_dtype.itemsize

    # Cast only if needed (casts are hoisted when params are stored in bf16).
    x2d = x.reshape(M, emb)
    x2d = x2d if x2d.dtype == cdt else x2d.astype(cdt)
    w1c = w1 if w1.dtype == cdt else w1.astype(cdt)
    w2c = w2 if w2.dtype == cdt else w2.astype(cdt)
    b1_2d = b1.reshape(1, hidden).astype(jnp.float32)
    b2_2d = b2.reshape(1, emb).astype(jnp.float32)

    # Row tile (multiple of 8, never larger than needed for M).
    tm_eff = min(tm, max(8, ((M + 7) // 8) * 8))
    n_row_tiles = pl.cdiv(M, tm_eff)

    row_sem = pltpu.CORE_PARALLEL if core_parallel else "parallel"
    gelu_dt = jnp.dtype(gelu_dtype)

    wbuf = 1 if single_buffer_resident_weights else 2
    resident_need = _resident_vmem_bytes(tm_eff, emb, hidden, cb, ob, wbuf)
    use_resident = (not force_reduction) and resident_need <= vmem_budget_bytes

    common_bytes = (M * emb * cb                       # x read
                    + M * emb * ob                     # output write
                    + (hidden + emb) * 4)              # biases (once, roughly)
    weight_bytes = (w1c.size + w2c.size) * cb

    if use_resident:
        # ----- weights-resident path: 1-D grid over row tiles only -----------
        w_kwargs = ({'pipeline_mode': pl.Buffered(1)}
                    if single_buffer_resident_weights else {})
        grid = (n_row_tiles,)
        vmem_limit = int(min(vmem_budget_bytes, max(resident_need, 32 << 20)))
        cost = pl.CostEstimate(
            flops=4 * M * emb * hidden,
            transcendentals=M * hidden,
            bytes_accessed=common_bytes + weight_bytes,   # weights streamed once
        )
        out2d = pl.pallas_call(
            functools.partial(_ffn_kernel_resident, gelu_dtype=gelu_dt),
            out_shape=jax.ShapeDtypeStruct((M, emb), out_dtype),
            grid_spec=pltpu.PrefetchScalarGridSpec(
                num_scalar_prefetch=0,
                grid=grid,
                in_specs=[
                    pl.BlockSpec((tm_eff, emb), lambda i: (i, 0)),          # x rows
                    pl.BlockSpec((emb, hidden), lambda i: (0, 0), **w_kwargs),  # W1
                    pl.BlockSpec((1, hidden), lambda i: (0, 0), **w_kwargs),    # b1
                    pl.BlockSpec((hidden, emb), lambda i: (0, 0), **w_kwargs),  # W2
                    pl.BlockSpec((1, emb), lambda i: (0, 0), **w_kwargs),       # b2
                ],
                out_specs=pl.BlockSpec((tm_eff, emb), lambda i: (i, 0)),
            ),
            compiler_params=pltpu.CompilerParams(
                dimension_semantics=(row_sem,),
                vmem_limit_bytes=vmem_limit,
            ),
            cost_estimate=cost,
        )(x2d, w1c, b1_2d, w2c, b2_2d)
        return out2d.reshape(batch, seq, emb)

    # ----- streaming path: hidden reduction as last ("arbitrary") grid axis ---
    align = 256 if (hidden % 256 == 0 and th % 256 == 0) else 128
    th_eff = _pick_hidden_tile(hidden, th, align)

    # Auto-shrink tiles (never clamp the limit below the true need — v7x-safe).
    while _reduce_vmem_bytes(tm_eff, th_eff, emb, cb, ob) > vmem_budget_bytes:
        if th_eff > align and th_eff > 128:
            th_eff = _pick_hidden_tile(hidden, th_eff - align, align)
        elif tm_eff > 128:
            tm_eff = max(128, tm_eff // 2)
        else:
            break
    n_row_tiles = pl.cdiv(M, tm_eff)

    reduce_need = _reduce_vmem_bytes(tm_eff, th_eff, emb, cb, ob)
    vmem_limit = int(min(vmem_budget_bytes, max(reduce_need, 32 << 20)))
    grid = (n_row_tiles, hidden // th_eff)   # reduction axis last

    cost = pl.CostEstimate(
        flops=4 * M * emb * hidden,
        transcendentals=M * hidden,
        # Weights are re-streamed once per row tile in this path.
        bytes_accessed=common_bytes + n_row_tiles * weight_bytes,
    )

    out2d = pl.pallas_call(
        functools.partial(_ffn_kernel_reduce, gelu_dtype=gelu_dt),
        out_shape=jax.ShapeDtypeStruct((M, emb), out_dtype),
        grid_spec=pltpu.PrefetchScalarGridSpec(
            num_scalar_prefetch=0,
            grid=grid,
            in_specs=[
                pl.BlockSpec((tm_eff, emb), lambda i, j: (i, 0)),   # x rows tile
                pl.BlockSpec((emb, th_eff), lambda i, j: (0, j)),   # W1 slab
                pl.BlockSpec((1, th_eff), lambda i, j: (0, j)),     # b1 slab
                pl.BlockSpec((th_eff, emb), lambda i, j: (j, 0)),   # W2 slab
                pl.BlockSpec((1, emb), lambda i, j: (0, 0)),        # b2 (invariant)
            ],
            out_specs=pl.BlockSpec((tm_eff, emb), lambda i, j: (i, 0)),
            scratch_shapes=[pltpu.VMEM((tm_eff, emb), jnp.float32)],  # f32 acc
        ),
        compiler_params=pltpu.CompilerParams(
            dimension_semantics=(row_sem, "arbitrary"),
            vmem_limit_bytes=vmem_limit,
        ),
        cost_estimate=cost,
    )(x2d, w1c, b1_2d, w2c, b2_2d)
    return out2d.reshape(batch, seq, emb)


def _reference(x, w1, b1, w2, b2):
    h = x @ w1 + b1
    c = jnp.sqrt(jnp.float32(2.0 / jnp.pi))
    g = 0.5 * h * (1.0 + jnp.tanh(c * (h + 0.044715 * h ** 3)))
    return g @ w2 + b2


if __name__ == "__main__":
    # Lane-dense small config: emb_dim=128 -> hidden=4*emb_dim=512, M = 2*64 = 128.
    batch, seq, emb = 2, 64, 128
    hidden = 4 * emb

    key = jax.random.PRNGKey(0)
    kx, kw1, kb1, kw2, kb2 = jax.random.split(key, 5)
    x = jax.random.normal(kx, (batch, seq, emb), dtype=jnp.float32)
    # nn.Linear weights stored transposed for x @ W.
    w1 = jax.random.normal(kw1, (emb, hidden), dtype=jnp.float32) * 0.02
    b1 = jax.random.normal(kb1, (hidden,), dtype=jnp.float32) * 0.02
    w2 = jax.random.normal(kw2, (hidden, emb), dtype=jnp.float32) * 0.02
    b2 = jax.random.normal(kb2, (emb,), dtype=jnp.float32) * 0.02

    # Simulate bf16-stored parameters: per-call weight casts are hoisted away.
    w1_bf = w1.astype(jnp.bfloat16)
    w2_bf = w2.astype(jnp.bfloat16)

    ref = _reference(x, w1, b1, w2, b2)

    # Path 1: weights-resident-in-VMEM fast path (default for small/medium MLPs).
    out_res = feed_forward(x, w1_bf, b1, w2_bf, b2)
    jax.block_until_ready(out_res)
    assert out_res.shape == (batch, seq, emb)
    assert jnp.allclose(out_res, ref, atol=2e-2, rtol=2e-2), (
        float(jnp.max(jnp.abs(out_res - ref))))

    # Path 2: hidden-reduction streaming path with small tiles, so multiple row
    # tiles and multiple reduction steps (accumulator init/finalize) execute.
    out_red = feed_forward(x, w1_bf, b1, w2_bf, b2, tm=64, th=128,
                           force_reduction=True)
    jax.block_until_ready(out_red)
    assert out_red.shape == (batch, seq, emb)
    assert jnp.allclose(out_red, ref, atol=2e-2, rtol=2e-2), (
        float(jnp.max(jnp.abs(out_red - ref))))

    print("KERNEL_OK")
</pallas_src>

<mosaic_0001>
module attributes {stable_mosaic.version = 11 : i64} {
  func.func @_ffn_kernel_resident(%arg0: i32, %arg1: memref<128x128xbf16, #tpu.memory_space<vmem>>, %arg2: memref<128x512xbf16, #tpu.memory_space<vmem>>, %arg3: memref<1x512xf32, #tpu.memory_space<vmem>>, %arg4: memref<512x128xbf16, #tpu.memory_space<vmem>>, %arg5: memref<1x128xf32, #tpu.memory_space<vmem>>, %arg6: memref<128x128xf32, #tpu.memory_space<vmem>>) attributes {dimension_semantics = [#tpu.dimension_semantics<parallel>], iteration_bounds = array<i64: 1>, scalar_prefetch = 0 : i64, scratch_operands = 0 : i64, tpu.core_type = #tpu.core_type<tc>, window_params = [{transform_indices = @transform_0, window_bounds = array<i64: 128, 128>}, {pipeline_mode = #tpu.pipeline_mode<synchronous>, transform_indices = @transform_1, window_bounds = array<i64: 128, 512>}, {pipeline_mode = #tpu.pipeline_mode<synchronous>, transform_indices = @transform_2, window_bounds = array<i64: 1, 512>}, {pipeline_mode = #tpu.pipeline_mode<synchronous>, transform_indices = @transform_3, window_bounds = array<i64: 512, 128>}, {pipeline_mode = #tpu.pipeline_mode<synchronous>, transform_indices = @transform_4, window_bounds = array<i64: 1, 128>}, {transform_indices = @transform_5, window_bounds = array<i64: 128, 128>}]} {
    %c0 = arith.constant 0 : index
    %c0_0 = arith.constant 0 : index
    %0 = vector.load %arg1[%c0, %c0_0] : memref<128x128xbf16, #tpu.memory_space<vmem>>, vector<128x128xbf16>
    %c0_1 = arith.constant 0 : index
    %c0_2 = arith.constant 0 : index
    %1 = vector.load %arg2[%c0_1, %c0_2] : memref<128x512xbf16, #tpu.memory_space<vmem>>, vector<128x512xbf16>
    %cst = arith.constant dense<0.000000e+00> : vector<128x512xf32>
    %2 = tpu.matmul %0, %1, %cst {dimension_numbers = #tpu.dot_dimension_numbers<[1], [0], [0], [1], [0, 0, 1, 1], [], []>} : vector<128x128xbf16>, vector<128x512xbf16>, vector<128x512xf32> -> vector<128x512xf32>
    %c0_3 = arith.constant 0 : index
    %c0_4 = arith.constant 0 : index
    %3 = vector.load %arg3[%c0_3, %c0_4] : memref<1x512xf32, #tpu.memory_space<vmem>>, vector<1x512xf32>
    %4 = vector.broadcast %3 : vector<1x512xf32> to vector<128x512xf32>
    %5 = arith.addf %2, %4 : vector<128x512xf32>
    %cst_5 = arith.constant 5.000000e-01 : f32
    %6 = vector.broadcast %cst_5 : f32 to vector<128x512xf32>
    %7 = arith.mulf %6, %5 : vector<128x512xf32>
    %8 = arith.mulf %5, %5 : vector<128x512xf32>
    %9 = arith.mulf %8, %5 : vector<128x512xf32>
    %cst_6 = arith.constant 4.471500e-02 : f32
    %10 = vector.broadcast %cst_6 : f32 to vector<128x512xf32>
    %11 = arith.mulf %10, %9 : vector<128x512xf32>
    %12 = arith.addf %5, %11 : vector<128x512xf32>
    %cst_7 = arith.constant 0.797884583 : f32
    %13 = vector.broadcast %cst_7 : f32 to vector<128x512xf32>
    %14 = arith.mulf %13, %12 : vector<128x512xf32>
    %15 = math.tanh %14 : vector<128x512xf32>
    %cst_8 = arith.constant 1.000000e+00 : f32
    %16 = vector.broadcast %cst_8 : f32 to vector<128x512xf32>
    %17 = arith.addf %16, %15 : vector<128x512xf32>
    %18 = arith.mulf %7, %17 : vector<128x512xf32>
    %19 = arith.truncf %18 : vector<128x512xf32> to vector<128x512xbf16>
    %c0_9 = arith.constant 0 : index
    %c0_10 = arith.constant 0 : index
    %20 = vector.load %arg4[%c0_9, %c0_10] : memref<512x128xbf16, #tpu.memory_space<vmem>>, vector<512x128xbf16>
    %cst_11 = arith.constant dense<0.000000e+00> : vector<128x128xf32>
    %21 = tpu.matmul %19, %20, %cst_11 {dimension_numbers = #tpu.dot_dimension_numbers<[1], [0], [0], [1], [0, 0, 1, 1], [], []>} : vector<128x512xbf16>, vector<512x128xbf16>, vector<128x128xf32> -> vector<128x128xf32>
    %c0_12 = arith.constant 0 : index
    %c0_13 = arith.constant 0 : index
    %22 = vector.load %arg5[%c0_12, %c0_13] : memref<1x128xf32, #tpu.memory_space<vmem>>, vector<1x128xf32>
    %23 = vector.broadcast %22 : vector<1x128xf32> to vector<128x128xf32>
    %24 = arith.addf %21, %23 : vector<128x128xf32>
    %c0_14 = arith.constant 0 : index
    %c0_15 = arith.constant 0 : index
    %25 = vector.load %arg6[%c0_14, %c0_15] : memref<128x128xf32, #tpu.memory_space<vmem>>, vector<128x128xf32>
    tpu.vector_store %arg6[%c0_14, %c0_15], %24 {strides = array<i32>} : memref<128x128xf32, #tpu.memory_space<vmem>>, vector<128x128xf32>,
    return
  }
  func.func @transform_0(%arg0: i32) -> (i32, i32) {
    %c0_i32 = arith.constant 0 : i32
    %c0_i32_0 = arith.constant 0 : i32
    return %arg0, %c0_i32 : i32, i32
  }
  func.func @transform_1(%arg0: i32) -> (i32, i32) {
    %c0_i32 = arith.constant 0 : i32
    %c0_i32_0 = arith.constant 0 : i32
    %c0_i32_1 = arith.constant 0 : i32
    return %c0_i32, %c0_i32_0 : i32, i32
  }
  func.func @transform_2(%arg0: i32) -> (i32, i32) {
    %c0_i32 = arith.constant 0 : i32
    %c0_i32_0 = arith.constant 0 : i32
    %c0_i32_1 = arith.constant 0 : i32
    return %c0_i32, %c0_i32_0 : i32, i32
  }
  func.func @transform_3(%arg0: i32) -> (i32, i32) {
    %c0_i32 = arith.constant 0 : i32
    %c0_i32_0 = arith.constant 0 : i32
    %c0_i32_1 = arith.constant 0 : i32
    return %c0_i32, %c0_i32_0 : i32, i32
  }
  func.func @transform_4(%arg0: i32) -> (i32, i32) {
    %c0_i32 = arith.constant 0 : i32
    %c0_i32_0 = arith.constant 0 : i32
    %c0_i32_1 = arith.constant 0 : i32
    return %c0_i32, %c0_i32_0 : i32, i32
  }
  func.func @transform_5(%arg0: i32) -> (i32, i32) {
    %c0_i32 = arith.constant 0 : i32
    %c0_i32_0 = arith.constant 0 : i32
    return %arg0, %c0_i32 : i32, i32
  }
}

</mosaic_0001>

<llo_original>
// kernel: tpu_custom_call.1
$region0: #{tpu_custom_call.1}
  #allocation0 [shape = 'u32[]', space=smem, size = 0x4, offset = 0x4, fixed_abs, tag = 'smem constant byte address 0x4 - core index']
  #allocation1 [shape = 'u32[144,128]{1,0:T(1,128)}', space=vmem, size = 0x12000, scoped, tag = 'internal scratch']
  %s0 = inlined_call_operand.hbm [shape: bf16[128,128], index: 0, kind: input, shape index: {}]
  %s1 = inlined_call_operand.hbm [shape: bf16[128,512], index: 1, kind: input, shape index: {}]
  %s2 = inlined_call_operand.vmem [shape: f32[1,512], index: 2, kind: input, shape index: {}]
  %s3 = inlined_call_operand.hbm [shape: bf16[512,128], index: 3, kind: input, shape index: {}]
  %s4 = inlined_call_operand.vmem [shape: f32[1,128], index: 4, kind: input, shape index: {}]
  %s5 = inlined_call_operand.hbm [shape: f32[128,128], index: 5, kind: output, shape index: {}]
  %s6 = sld [smem:[#allocation0]]
  $region42: #{tpu_custom_call.1} parent=0
    _
  %s8 = ssub.s32 1, %s6
  %s9 = scalar_select 0, %s8, %s6
  $region1: #{tpu_custom_call.1} parent=0
    #allocation2 [shape = 'u8[32768]{0}', space=vmem, size = 0x8000, scoped, tag = 'input window, operand 0, single buffered']
    #allocation3 [shape = 's32[1]{0}', space=sflag, size = 0x4, scoped, tag = 'scoped memory for tpu_custom_call.1']
    #allocation4 [shape = 's32[1]{0}', space=sflag, size = 0x4, scoped, tag = 'scoped memory for tpu_custom_call.1']
    #allocation5 [shape = 'u8[131072]{0}', space=vmem, size = 0x20000, scoped, tag = 'input window, operand 1, single buffered']
    #allocation6 [shape = 's32[1]{0}', space=sflag, size = 0x4, scoped, tag = 'scoped memory for tpu_custom_call.1']
    #allocation7 [shape = 'u8[131072]{0}', space=vmem, size = 0x20000, scoped, tag = 'input window, operand 3, single buffered']
    #allocation8 [shape = 'u8[65536]{0}', space=vmem, size = 0x10000, scoped, tag = 'output window, operand 0, single buffered']
    %10 = vsyncpa [#allocation3], 0
    %11 = vsyncpa [#allocation6], 0
    %12 = vsyncpa [#allocation4], 0
    // Predicated region
    $region2: #{tpu_custom_call.1} parent=1 // pred_check
      _
    $region3: #{tpu_custom_call.1} parent=1 // pred_check_branch
      %14 = sbr.rel (0) target = $region5
    $region4: #{tpu_custom_call.1} parent=1 // pred_region
      %s16 = ssub.s32 1024, 1024
      %17 = vsyncadd [#allocation3], %s16
      %s18 = sshll.u32 [#allocation2], 4
      %s19 = int_to_ptr.vmem [resolvable:$true] %s18
      %24 = dma.hbm_to_vmem [thread:$0]  %s0, 1024, %s19, [#allocation3], 64, 64, 4
    $region5: #{tpu_custom_call.1} parent=1 // pred_fallthru
      _
    // Predicated region
    $region6: #{tpu_custom_call.1} parent=1 // pred_check
      _
    $region7: #{tpu_custom_call.1} parent=1 // pred_check_branch
      %26 = sbr.rel (0) target = $region9
    $region8: #{tpu_custom_call.1} parent=1 // pred_region
      %s28 = ssub.s32 4096, 4096
      %29 = vsyncadd [#allocation6], %s28
      %s30 = sshll.u32 [#allocation5], 4
      %s31 = int_to_ptr.vmem [resolvable:$true] %s30
      %36 = dma.hbm_to_vmem [thread:$0]  %s1, 4096, %s31, [#allocation6], 256, 256, 16
    $region9: #{tpu_custom_call.1} parent=1 // pred_fallthru
      _
    // Predicated region
    $region10: #{tpu_custom_call.1} parent=1 // pred_check
      _
    $region11: #{tpu_custom_call.1} parent=1 // pred_check_branch
      %38 = sbr.rel (0) target = $region13
    $region12: #{tpu_custom_call.1} parent=1 // pred_region
      _
    $region13: #{tpu_custom_call.1} parent=1 // pred_fallthru
      _
    // Predicated region
    $region14: #{tpu_custom_call.1} parent=1 // pred_check
      _
    $region15: #{tpu_custom_call.1} parent=1 // pred_check_branch
      %40 = sbr.rel (0) target = $region17
    $region16: #{tpu_custom_call.1} parent=1 // pred_region
      %s42 = ssub.s32 4096, 4096
      %43 = vsyncadd [#allocation6], %s42
      %s44 = sshll.u32 [#allocation7], 4
      %s45 = int_to_ptr.vmem [resolvable:$true] %s44
      %50 = dma.hbm_to_vmem [thread:$0]  %s3, 4096, %s45, [#allocation6], 64, 64, 4
    $region17: #{tpu_custom_call.1} parent=1 // pred_fallthru
      _
    // Predicated region
    $region18: #{tpu_custom_call.1} parent=1 // pred_check
      _
    $region19: #{tpu_custom_call.1} parent=1 // pred_check_branch
      %52 = sbr.rel (0) target = $region21
    $region20: #{tpu_custom_call.1} parent=1 // pred_region
      _
    $region21: #{tpu_custom_call.1} parent=1 // pred_fallthru
      _
    // Predicated region
    $region22: #{tpu_custom_call.1} parent=1 // pred_check
      _
    $region23: #{tpu_custom_call.1} parent=1 // pred_check_branch
      %54 = sbr.rel (0) target = $region25
    $region24: #{tpu_custom_call.1} parent=1 // pred_region
      %55 = dma.done [#allocation3], 1024
    $region25: #{tpu_custom_call.1} parent=1 // pred_fallthru
      _
    // Predicated region
    $region26: #{tpu_custom_call.1} parent=1 // pred_check
      _
    $region27: #{tpu_custom_call.1} parent=1 // pred_check_branch
      %57 = sbr.rel (0) target = $region29
    $region28: #{tpu_custom_call.1} parent=1 // pred_region
      %58 = dma.done [#allocation6], 4096
    $region29: #{tpu_custom_call.1} parent=1 // pred_fallthru
      _
    // Predicated region
    $region30: #{tpu_custom_call.1} parent=1 // pred_check
      _
    $region31: #{tpu_custom_call.1} parent=1 // pred_check_branch
      %60 = sbr.rel (0) target = $region33
    $region32: #{tpu_custom_call.1} parent=1 // pred_region
      %61 = dma.done [#allocation6], 4096
    $region33: #{tpu_custom_call.1} parent=1 // pred_fallthru
      _
    %v63 = vld [vmem:[#allocation2] sm:$0xf]
    %v64 = vld [vmem:[#allocation2 + $0x4] sm:$0xf]
    %v65 = vld [vmem:[#allocation2 + $0x8] sm:$0xf]
    %v66 = vld [vmem:[#allocation2 + $0xc] sm:$0xf]
    %v67 = vld [vmem:[#allocation2 + $0x10] sm:$0xf]
    %v68 = vld [vmem:[#allocation2 + $0x14] sm:$0xf]
    %v69 = vld [vmem:[#allocation2 + $0x18] sm:$0xf]
    %v70 = vld [vmem:[#allocation2 + $0x1c] sm:$0xf]
    %v71 = vld [vmem:[#allocation2 + $0x20] sm:$0xf]
    %v72 = vld [vmem:[#allocation2 + $0x24] sm:$0xf]
    %v73 = vld [vmem:[#allocation2 + $0x28] sm:$0xf]
    %v74 = vld [vmem:[#allocation2 + $0x2c] sm:$0xf]
    %v75 = vld [vmem:[#allocation2 + $0x30] sm:$0xf]
    %v76 = vld [vmem:[#allocation2 + $0x34] sm:$0xf]
    %v77 = vld [vmem:[#allocation2 + $0x38] sm:$0xf]
    %v78 = vld [vmem:[#allocation2 + $0x3c] sm:$0xf]
    %v79 = vld [vmem:[#allocation5] sm:$0xff]
    %v80 = vld [vmem:[#allocation5 + $0x8] sm:$0xff]
    %v81 = vld [vmem:[#allocation5 + $0x10] sm:$0xff]
    %v82 = vld [vmem:[#allocation5 + $0x18] sm:$0xff]
    %v83 = vld [vmem:[#allocation5 + $0x20] sm:$0xff]
    %v84 = vld [vmem:[#allocation5 + $0x28] sm:$0xff]
    %v85 = vld [vmem:[#allocation5 + $0x30] sm:$0xff]
    %v86 = vld [vmem:[#allocation5 + $0x38] sm:$0xff]
    %v87 = vld [vmem:[#allocation5 + $0x40] sm:$0xff]
    %v88 = vld [vmem:[#allocation5 + $0x48] sm:$0xff]
    %v89 = vld [vmem:[#allocation5 + $0x50] sm:$0xff]
    %v90 = vld [vmem:[#allocation5 + $0x58] sm:$0xff]
    %v91 = vld [vmem:[#allocation5 + $0x60] sm:$0xff]
    %v92 = vld [vmem:[#allocation5 + $0x68] sm:$0xff]
    %v93 = vld [vmem:[#allocation5 + $0x70] sm:$0xff]
    %v94 = vld [vmem:[#allocation5 + $0x78] sm:$0xff]
    %v95 = vld [vmem:[#allocation5 + $0x80] sm:$0xff]
    %v96 = vld [vmem:[#allocation5 + $0x88] sm:$0xff]
    %v97 = vld [vmem:[#allocation5 + $0x90] sm:$0xff]
    %v98 = vld [vmem:[#allocation5 + $0x98] sm:$0xff]
    %v99 = vld [vmem:[#allocation5 + $0xa0] sm:$0xff]
    %v100 = vld [vmem:[#allocation5 + $0xa8] sm:$0xff]
    %v101 = vld [vmem:[#allocation5 + $0xb0] sm:$0xff]
    %v102 = vld [vmem:[#allocation5 + $0xb8] sm:$0xff]
    %v103 = vld [vmem:[#allocation5 + $0xc0] sm:$0xff]
    %v104 = vld [vmem:[#allocation5 + $0xc8] sm:$0xff]
    %v105 = vld [vmem:[#allocation5 + $0xd0] sm:$0xff]
    %v106 = vld [vmem:[#allocation5 + $0xd8] sm:$0xff]
    %v107 = vld [vmem:[#allocation5 + $0xe0] sm:$0xff]
    %v108 = vld [vmem:[#allocation5 + $0xe8] sm:$0xff]
    %v109 = vld [vmem:[#allocation5 + $0xf0] sm:$0xff]
    %v110 = vld [vmem:[#allocation5 + $0xf8] sm:$0xff]
    %v111 = vld [vmem:[%s2] sm:$0xf]
    %v113 = vlaneseq
    %v114 = vshrl.u32 %v113, 7
    %v115 = vsub.s32 0, %v114
    %v116 = vrot.slane %v111, %v115
    %v117 = vlaneseq
    %v118 = vshrl.u32 %v117, 7
    %v119 = vsub.s32 1, %v118
    %v120 = vrot.slane %v111, %v119
    %v121 = vlaneseq
    %v122 = vshrl.u32 %v121, 7
    %v123 = vsub.s32 2, %v122
    %v124 = vrot.slane %v111, %v123
    %v125 = vlaneseq
    %v126 = vshrl.u32 %v125, 7
    %v127 = vsub.s32 3, %v126
    %v128 = vrot.slane %v111, %v127
    %v149 = vunpack.c.l.b16 %v63
    %v150 = vunpack.c.l.b16 %v64
    %v151 = vunpack.c.l.b16 %v65
    %v152 = vunpack.c.l.b16 %v66
    %v153 = vunpack.c.l.b16 %v67
    %v154 = vunpack.c.l.b16 %v68
    %v155 = vunpack.c.l.b16 %v69
    %v156 = vunpack.c.l.b16 %v70
    %v157 = vunpack.c.l.b16 %v71
    %v158 = vunpack.c.l.b16 %v72
    %v159 = vunpack.c.l.b16 %v73
    %v160 = vunpack.c.l.b16 %v74
    %v161 = vunpack.c.l.b16 %v75
    %v162 = vunpack.c.l.b16 %v76
    %v163 = vunpack.c.l.b16 %v77
    %v164 = vunpack.c.l.b16 %v78
    %v165 = vpack.c.b16 %v150, %v149
    %v166 = vpack.c.b16 %v152, %v151
    %v167 = vpack.c.b16 %v154, %v153
    %v168 = vpack.c.b16 %v156, %v155
    %v169 = vpack.c.b16 %v158, %v157
    %v170 = vpack.c.b16 %v160, %v159
    %v171 = vpack.c.b16 %v162, %v161
    %v172 = vpack.c.b16 %v164, %v163
    %v213 = vunpack.c.l.b16 %v79
    %v214 = vunpack.c.h.b16 %v79
    %v215 = vunpack.c.l.b16 %v80
    %v216 = vunpack.c.h.b16 %v80
    %v217 = vunpack.c.l.b16 %v81
    %v218 = vunpack.c.h.b16 %v81
    %v219 = vunpack.c.l.b16 %v82
    %v220 = vunpack.c.h.b16 %v82
    %v221 = vunpack.c.l.b16 %v83
    %v222 = vunpack.c.h.b16 %v83
    %v223 = vunpack.c.l.b16 %v84
    %v224 = vunpack.c.h.b16 %v84
    %v225 = vunpack.c.l.b16 %v85
    %v226 = vunpack.c.h.b16 %v85
    %v227 = vunpack.c.l.b16 %v86
    %v228 = vunpack.c.h.b16 %v86
    %v229 = vunpack.c.l.b16 %v87
    %v230 = vunpack.c.h.b16 %v87
    %v231 = vunpack.c.l.b16 %v88
    %v232 = vunpack.c.h.b16 %v88
    %v233 = vunpack.c.l.b16 %v89
    %v234 = vunpack.c.h.b16 %v89
    %v235 = vunpack.c.l.b16 %v90
    %v236 = vunpack.c.h.b16 %v90
    %v237 = vunpack.c.l.b16 %v91
    %v238 = vunpack.c.h.b16 %v91
    %v239 = vunpack.c.l.b16 %v92
    %v240 = vunpack.c.h.b16 %v92
    %v241 = vunpack.c.l.b16 %v93
    %v242 = vunpack.c.h.b16 %v93
    %v243 = vunpack.c.l.b16 %v94
    %v244 = vunpack.c.h.b16 %v94
    %v245 = vunpack.c.l.b16 %v95
    %v246 = vunpack.c.h.b16 %v95
    %v247 = vunpack.c.l.b16 %v96
    %v248 = vunpack.c.h.b16 %v96
    %v249 = vunpack.c.l.b16 %v97
    %v250 = vunpack.c.h.b16 %v97
    %v251 = vunpack.c.l.b16 %v98
    %v252 = vunpack.c.h.b16 %v98
    %v253 = vunpack.c.l.b16 %v99
    %v254 = vunpack.c.h.b16 %v99
    %v255 = vunpack.c.l.b16 %v100
    %v256 = vunpack.c.h.b16 %v100
    %v257 = vunpack.c.l.b16 %v101
    %v258 = vunpack.c.h.b16 %v101
    %v259 = vunpack.c.l.b16 %v102
    %v260 = vunpack.c.h.b16 %v102
    %v261 = vunpack.c.l.b16 %v103
    %v262 = vunpack.c.h.b16 %v103
    %v263 = vunpack.c.l.b16 %v104
    %v264 = vunpack.c.h.b16 %v104
    %v265 = vunpack.c.l.b16 %v105
    %v266 = vunpack.c.h.b16 %v105
    %v267 = vunpack.c.l.b16 %v106
    %v268 = vunpack.c.h.b16 %v106
    %v269 = vunpack.c.l.b16 %v107
    %v270 = vunpack.c.h.b16 %v107
    %v271 = vunpack.c.l.b16 %v108
    %v272 = vunpack.c.h.b16 %v108
    %v273 = vunpack.c.l.b16 %v109
    %v274 = vunpack.c.h.b16 %v109
    %v275 = vunpack.c.l.b16 %v110
    %v276 = vunpack.c.h.b16 %v110
    %v277 = vpack.c.b16 %v217, %v213
    %v278 = vpack.c.b16 %v218, %v214
    %v279 = vpack.c.b16 %v219, %v215
    %v280 = vpack.c.b16 %v220, %v216
    %v281 = vpack.c.b16 %v225, %v221
    %v282 = vpack.c.b16 %v226, %v222
    %v283 = vpack.c.b16 %v227, %v223
    %v284 = vpack.c.b16 %v228, %v224
    %v285 = vpack.c.b16 %v233, %v229
    %v286 = vpack.c.b16 %v234, %v230
    %v287 = vpack.c.b16 %v235, %v231
    %v288 = vpack.c.b16 %v236, %v232
    %v289 = vpack.c.b16 %v241, %v237
    %v290 = vpack.c.b16 %v242, %v238
    %v291 = vpack.c.b16 %v243, %v239
    %v292 = vpack.c.b16 %v244, %v240
    %v293 = vpack.c.b16 %v249, %v245
    %v294 = vpack.c.b16 %v250, %v246
    %v295 = vpack.c.b16 %v251, %v247
    %v296 = vpack.c.b16 %v252, %v248
    %v297 = vpack.c.b16 %v257, %v253
    %v298 = vpack.c.b16 %v258, %v254
    %v299 = vpack.c.b16 %v259, %v255
    %v300 = vpack.c.b16 %v260, %v256
    %v301 = vpack.c.b16 %v265, %v261
    %v302 = vpack.c.b16 %v266, %v262
    %v303 = vpack.c.b16 %v267, %v263
    %v304 = vpack.c.b16 %v268, %v264
    %v305 = vpack.c.b16 %v273, %v269
    %v306 = vpack.c.b16 %v274, %v270
    %v307 = vpack.c.b16 %v275, %v271
    %v308 = vpack.c.b16 %v276, %v272
    %341 = vmatprep.subr.bf16.mxu0 %v278
    %342 = vmatpush1.bf16.msra.mxu0 %v277
    %343 = vmatprep.subr.bf16.mxu0 %v282
    %344 = vmatpush1.bf16.msra.mxu0 %v281
    %345 = vmatprep.subr.bf16.mxu0 %v286
    %346 = vmatpush1.bf16.msra.mxu0 %v285
    %347 = vmatprep.subr.bf16.mxu0 %v290
    %348 = vmatpush1.bf16.msra.mxu0 %v289
    %349 = vmatprep.subr.bf16.mxu0 %v294
    %350 = vmatpush1.bf16.msra.mxu0 %v293
    %351 = vmatprep.subr.bf16.mxu0 %v298
    %352 = vmatpush1.bf16.msra.mxu0 %v297
    %353 = vmatprep.subr.bf16.mxu0 %v302
    %354 = vmatpush1.bf16.msra.mxu0 %v301
    %355 = vmatprep.subr.bf16.mxu0 %v306
    %356 = vmatpush1.bf16.msra.mxu0 %v305
    %357 = vmatprep.subr.bf16.mxu0 0
    %358 = vmatpush1.bf16.msra.mxu0 0
    %359 = vmatprep.subr.bf16.mxu0 0
    %360 = vmatpush1.bf16.msra.mxu0 0
    %361 = vmatprep.subr.bf16.mxu0 0
    %362 = vmatpush1.bf16.msra.mxu0 0
    %363 = vmatprep.subr.bf16.mxu0 0
    %364 = vmatpush1.bf16.msra.mxu0 0
    %365 = vmatprep.subr.bf16.mxu0 0
    %366 = vmatpush1.bf16.msra.mxu0 0
    %367 = vmatprep.subr.bf16.mxu0 0
    %368 = vmatpush1.bf16.msra.mxu0 0
    %369 = vmatprep.subr.bf16.mxu0 0
    %370 = vmatpush1.bf16.msra.mxu0 0
    %371 = vmatprep.subr.bf16.mxu0 0
    %372 = vmatpush1.bf16.msra.mxu0 0
    %373 = vmatprep.mubr.bf16.mxu0 0
    %374 = vmatmul.mubr.bf16.gmra.mrb[0].mxu0 %v165
    %v375 = vpop.f32.mrb[0].mxu0
    %v376 = vadd.f32 %v116, %v375
    %v377 = vpop.f32.mrb[0].mxu0
    %v378 = vadd.f32 %v120, %v377
    %v379 = vpop.f32.mrb[0].mxu0
    %v380 = vadd.f32 %v116, %v379
    %v381 = vpop.f32.mrb[0].mxu0
    %v382 = vadd.f32 %v120, %v381
    %383 = vmatprep.mubr.bf16.mxu0 0
    %384 = vmatmul.mubr.bf16.gmra.mrb[0].mxu0 %v166
    %v385 = vpop.f32.mrb[0].mxu0
    %v386 = vadd.f32 %v116, %v385
    %v387 = vpop.f32.mrb[0].mxu0
    %v388 = vadd.f32 %v120, %v387
    %v389 = vpop.f32.mrb[0].mxu0
    %v390 = vadd.f32 %v116, %v389
    %v391 = vpop.f32.mrb[0].mxu0
    %v392 = vadd.f32 %v120, %v391
    %393 = vmatprep.mubr.bf16.mxu0 0
    %394 = vmatmul.mubr.bf16.gmra.mrb[0].mxu0 %v167
    %v395 = vpop.f32.mrb[0].mxu0
    %v396 = vadd.f32 %v116, %v395
    %v397 = vpop.f32.mrb[0].mxu0
    %v398 = vadd.f32 %v120, %v397
    %v399 = vpop.f32.mrb[0].mxu0
    %v400 = vadd.f32 %v116, %v399
    %v401 = vpop.f32.mrb[0].mxu0
    %v402 = vadd.f32 %v120, %v401
    %403 = vmatprep.mubr.bf16.mxu0 0
    %404 = vmatmul.mubr.bf16.gmra.mrb[0].mxu0 %v168
    %v405 = vpop.f32.mrb[0].mxu0
    %v406 = vadd.f32 %v116, %v405
    %v407 = vpop.f32.mrb[0].mxu0
    %v408 = vadd.f32 %v120, %v407
    %v409 = vpop.f32.mrb[0].mxu0
    %v410 = vadd.f32 %v116, %v409
    %v411 = vpop.f32.mrb[0].mxu0
    %v412 = vadd.f32 %v120, %v411
    %413 = vmatprep.mubr.bf16.mxu0 0
    %414 = vmatmul.mubr.bf16.gmra.mrb[0].mxu0 %v169
    %v415 = vpop.f32.mrb[0].mxu0
    %v416 = vadd.f32 %v116, %v415
    %v417 = vpop.f32.mrb[0].mxu0
    %v418 = vadd.f32 %v120, %v417
    %v419 = vpop.f32.mrb[0].mxu0
    %v420 = vadd.f32 %v116, %v419
    %v421 = vpop.f32.mrb[0].mxu0
    %v422 = vadd.f32 %v120, %v421
    %423 = vmatprep.mubr.bf16.mxu0 0
    %424 = vmatmul.mubr.bf16.gmra.mrb[0].mxu0 %v170
    %v425 = vpop.f32.mrb[0].mxu0
    %v426 = vadd.f32 %v116, %v425
    %v427 = vpop.f32.mrb[0].mxu0
    %v428 = vadd.f32 %v120, %v427
    %v429 = vpop.f32.mrb[0].mxu0
    %v430 = vadd.f32 %v116, %v429
    %v431 = vpop.f32.mrb[0].mxu0
    %v432 = vadd.f32 %v120, %v431
    %433 = vmatprep.mubr.bf16.mxu0 0
    %434 = vmatmul.mubr.bf16.gmra.mrb[0].mxu0 %v171
    %v435 = vpop.f32.mrb[0].mxu0
    %v436 = vadd.f32 %v116, %v435
    %v437 = vpop.f32.mrb[0].mxu0
    %v438 = vadd.f32 %v120, %v437
    %v439 = vpop.f32.mrb[0].mxu0
    %v440 = vadd.f32 %v116, %v439
    %v441 = vpop.f32.mrb[0].mxu0
    %v442 = vadd.f32 %v120, %v441
    %443 = vmatprep.mubr.bf16.mxu0 0
    %444 = vmatmul.mubr.bf16.gmra.mrb[0].mxu0 %v172
    %v445 = vpop.f32.mrb[0].mxu0
    %v446 = vadd.f32 %v116, %v445
    %v447 = vpop.f32.mrb[0].mxu0
    %v448 = vadd.f32 %v120, %v447
    %v449 = vpop.f32.mrb[0].mxu0
    %v450 = vadd.f32 %v116, %v449
    %v451 = vpop.f32.mrb[0].mxu0
    %v452 = vadd.f32 %v120, %v451
    %453 = vdwg.mxu0
    %454 = vmatprep.subr.bf16.mxu0 %v280
    %455 = vmatpush1.bf16.msra.mxu0 %v279
    %456 = vmatprep.subr.bf16.mxu0 %v284
    %457 = vmatpush1.bf16.msra.mxu0 %v283
    %458 = vmatprep.subr.bf16.mxu0 %v288
    %459 = vmatpush1.bf16.msra.mxu0 %v287
    %460 = vmatprep.subr.bf16.mxu0 %v292
    %461 = vmatpush1.bf16.msra.mxu0 %v291
    %462 = vmatprep.subr.bf16.mxu0 %v296
    %463 = vmatpush1.bf16.msra.mxu0 %v295
    %464 = vmatprep.subr.bf16.mxu0 %v300
    %465 = vmatpush1.bf16.msra.mxu0 %v299
    %466 = vmatprep.subr.bf16.mxu0 %v304
    %467 = vmatpush1.bf16.msra.mxu0 %v303
    %468 = vmatprep.subr.bf16.mxu0 %v308
    %469 = vmatpush1.bf16.msra.mxu0 %v307
    %470 = vmatprep.subr.bf16.mxu0 0
    %471 = vmatpush1.bf16.msra.mxu0 0
    %472 = vmatprep.subr.bf16.mxu0 0
    %473 = vmatpush1.bf16.msra.mxu0 0
    %474 = vmatprep.subr.bf16.mxu0 0
    %475 = vmatpush1.bf16.msra.mxu0 0
    %476 = vmatprep.subr.bf16.mxu0 0
    %477 = vmatpush1.bf16.msra.mxu0 0
    %478 = vmatprep.subr.bf16.mxu0 0
    %479 = vmatpush1.bf16.msra.mxu0 0
    %480 = vmatprep.subr.bf16.mxu0 0
    %481 = vmatpush1.bf16.msra.mxu0 0
    %482 = vmatprep.subr.bf16.mxu0 0
    %483 = vmatpush1.bf16.msra.mxu0 0
    %484 = vmatprep.subr.bf16.mxu0 0
    %485 = vmatpush1.bf16.msra.mxu0 0
    %486 = vmatprep.mubr.bf16.mxu0 0
    %487 = vmatmul.mubr.bf16.gmra.mrb[0].mxu0 %v165
    %v488 = vpop.f32.mrb[0].mxu0
    %v489 = vadd.f32 %v124, %v488
    %v490 = vpop.f32.mrb[0].mxu0
    %v491 = vadd.f32 %v128, %v490
    %v492 = vpop.f32.mrb[0].mxu0
    %v493 = vadd.f32 %v124, %v492
    %v494 = vpop.f32.mrb[0].mxu0
    %v495 = vadd.f32 %v128, %v494
    %496 = vmatprep.mubr.bf16.mxu0 0
    %497 = vmatmul.mubr.bf16.gmra.mrb[0].mxu0 %v166
    %v498 = vpop.f32.mrb[0].mxu0
    %v499 = vadd.f32 %v124, %v498
    %v500 = vpop.f32.mrb[0].mxu0
    %v501 = vadd.f32 %v128, %v500
    %v502 = vpop.f32.mrb[0].mxu0
    %v503 = vadd.f32 %v124, %v502
    %v504 = vpop.f32.mrb[0].mxu0
    %v505 = vadd.f32 %v128, %v504
    %506 = vmatprep.mubr.bf16.mxu0 0
    %507 = vmatmul.mubr.bf16.gmra.mrb[0].mxu0 %v167
    %v508 = vpop.f32.mrb[0].mxu0
    %v509 = vadd.f32 %v124, %v508
    %v510 = vpop.f32.mrb[0].mxu0
    %v511 = vadd.f32 %v128, %v510
    %v512 = vpop.f32.mrb[0].mxu0
    %v513 = vadd.f32 %v124, %v512
    %v514 = vpop.f32.mrb[0].mxu0
    %v515 = vadd.f32 %v128, %v514
    %516 = vmatprep.mubr.bf16.mxu0 0
    %517 = vmatmul.mubr.bf16.gmra.mrb[0].mxu0 %v168
    %v518 = vpop.f32.mrb[0].mxu0
    %v519 = vadd.f32 %v124, %v518
    %v520 = vpop.f32.mrb[0].mxu0
    %v521 = vadd.f32 %v128, %v520
    %v522 = vpop.f32.mrb[0].mxu0
    %v523 = vadd.f32 %v124, %v522
    %v524 = vpop.f32.mrb[0].mxu0
    %v525 = vadd.f32 %v128, %v524
    %526 = vmatprep.mubr.bf16.mxu0 0
    %527 = vmatmul.mubr.bf16.gmra.mrb[0].mxu0 %v169
    %v528 = vpop.f32.mrb[0].mxu0
    %v529 = vadd.f32 %v124, %v528
    %v530 = vpop.f32.mrb[0].mxu0
    %v531 = vadd.f32 %v128, %v530
    %v532 = vpop.f32.mrb[0].mxu0
    %v533 = vadd.f32 %v124, %v532
    %v534 = vpop.f32.mrb[0].mxu0
    %v535 = vadd.f32 %v128, %v534
    %536 = vmatprep.mubr.bf16.mxu0 0
    %537 = vmatmul.mubr.bf16.gmra.mrb[0].mxu0 %v170
    %v538 = vpop.f32.mrb[0].mxu0
    %v539 = vadd.f32 %v124, %v538
    %v540 = vpop.f32.mrb[0].mxu0
    %v541 = vadd.f32 %v128, %v540
    %v542 = vpop.f32.mrb[0].mxu0
    %v543 = vadd.f32 %v124, %v542
    %v544 = vpop.f32.mrb[0].mxu0
    %v545 = vadd.f32 %v128, %v544
    %546 = vmatprep.mubr.bf16.mxu0 0
    %547 = vmatmul.mubr.bf16.gmra.mrb[0].mxu0 %v171
    %v548 = vpop.f32.mrb[0].mxu0
    %v549 = vadd.f32 %v124, %v548
    %v550 = vpop.f32.mrb[0].mxu0
    %v551 = vadd.f32 %v128, %v550
    %v552 = vpop.f32.mrb[0].mxu0
    %v553 = vadd.f32 %v124, %v552
    %v554 = vpop.f32.mrb[0].mxu0
    %v555 = vadd.f32 %v128, %v554
    %556 = vmatprep.mubr.bf16.mxu0 0
    %557 = vmatmul.mubr.bf16.gmra.mrb[0].mxu0 %v172
    %v558 = vpop.f32.mrb[0].mxu0
    %v559 = vadd.f32 %v124, %v558
    %v560 = vpop.f32.mrb[0].mxu0
    %v561 = vadd.f32 %v128, %v560
    %v562 = vpop.f32.mrb[0].mxu0
    %v563 = vadd.f32 %v124, %v562
    %v564 = vpop.f32.mrb[0].mxu0
    %v565 = vadd.f32 %v128, %v564
    %566 = vdwg.mxu0
    %v567 = vmul.f32 %v376, 0.5
    %v568 = vmul.f32 %v378, 0.5
    %v569 = vmul.f32 %v489, 0.5
    %v570 = vmul.f32 %v491, 0.5
    %v571 = vmul.f32 %v380, 0.5
    %v572 = vmul.f32 %v382, 0.5
    %v573 = vmul.f32 %v493, 0.5
    %v574 = vmul.f32 %v495, 0.5
    %v575 = vmul.f32 %v386, 0.5
    %v576 = vmul.f32 %v388, 0.5
    %v577 = vmul.f32 %v499, 0.5
    %v578 = vmul.f32 %v501, 0.5
    %v579 = vmul.f32 %v390, 0.5
    %v580 = vmul.f32 %v392, 0.5
    %v581 = vmul.f32 %v503, 0.5
    %v582 = vmul.f32 %v505, 0.5
    %v583 = vmul.f32 %v396, 0.5
    %v584 = vmul.f32 %v398, 0.5
    %v585 = vmul.f32 %v509, 0.5
    %v586 = vmul.f32 %v511, 0.5
    %v587 = vmul.f32 %v400, 0.5
    %v588 = vmul.f32 %v402, 0.5
    %v589 = vmul.f32 %v513, 0.5
    %v590 = vmul.f32 %v515, 0.5
    %v591 = vmul.f32 %v406, 0.5
    %v592 = vmul.f32 %v408, 0.5
    %v593 = vmul.f32 %v519, 0.5
    %v594 = vmul.f32 %v521, 0.5
    %v595 = vmul.f32 %v410, 0.5
    %v596 = vmul.f32 %v412, 0.5
    %v597 = vmul.f32 %v523, 0.5
    %v598 = vmul.f32 %v525, 0.5
    %v599 = vmul.f32 %v416, 0.5
    %v600 = vmul.f32 %v418, 0.5
    %v601 = vmul.f32 %v529, 0.5
    %v602 = vmul.f32 %v531, 0.5
    %v603 = vmul.f32 %v420, 0.5
    %v604 = vmul.f32 %v422, 0.5
    %v605 = vmul.f32 %v533, 0.5
    %v606 = vmul.f32 %v535, 0.5
    %v607 = vmul.f32 %v426, 0.5
    %v608 = vmul.f32 %v428, 0.5
    %v609 = vmul.f32 %v539, 0.5
    %v610 = vmul.f32 %v541, 0.5
    %v611 = vmul.f32 %v430, 0.5
    %v612 = vmul.f32 %v432, 0.5
    %v613 = vmul.f32 %v543, 0.5
    %v614 = vmul.f32 %v545, 0.5
    %v615 = vmul.f32 %v436, 0.5
    %v616 = vmul.f32 %v438, 0.5
    %v617 = vmul.f32 %v549, 0.5
    %v618 = vmul.f32 %v551, 0.5
    %v619 = vmul.f32 %v440, 0.5
    %v620 = vmul.f32 %v442, 0.5
    %v621 = vmul.f32 %v553, 0.5
    %v622 = vmul.f32 %v555, 0.5
    %v623 = vmul.f32 %v446, 0.5
    %v624 = vmul.f32 %v448, 0.5
    %v625 = vmul.f32 %v559, 0.5
    %v626 = vmul.f32 %v561, 0.5
    %v627 = vmul.f32 %v450, 0.5
    %v628 = vmul.f32 %v452, 0.5
    %v629 = vmul.f32 %v563, 0.5
    %v630 = vmul.f32 %v565, 0.5
    %v631 = vmul.f32 %v376, %v376
    %v632 = vmul.f32 %v378, %v378
    %v633 = vmul.f32 %v489, %v489
    %v634 = vmul.f32 %v491, %v491
    %v635 = vmul.f32 %v380, %v380
    %v636 = vmul.f32 %v382, %v382
    %v637 = vmul.f32 %v493, %v493
    %v638 = vmul.f32 %v495, %v495
    %v639 = vmul.f32 %v386, %v386
    %v640 = vmul.f32 %v388, %v388
    %v641 = vmul.f32 %v499, %v499
    %v642 = vmul.f32 %v501, %v501
    %v643 = vmul.f32 %v390, %v390
    %v644 = vmul.f32 %v392, %v392
    %v645 = vmul.f32 %v503, %v503
    %v646 = vmul.f32 %v505, %v505
    %v647 = vmul.f32 %v396, %v396
    %v648 = vmul.f32 %v398, %v398
    %v649 = vmul.f32 %v509, %v509
    %v650 = vmul.f32 %v511, %v511
    %v651 = vmul.f32 %v400, %v400
    %v652 = vmul.f32 %v402, %v402
    %v653 = vmul.f32 %v513, %v513
    %v654 = vmul.f32 %v515, %v515
    %v655 = vmul.f32 %v406, %v406
    %v656 = vmul.f32 %v408, %v408
    %v657 = vmul.f32 %v519, %v519
    %v658 = vmul.f32 %v521, %v521
    %v659 = vmul.f32 %v410, %v410
    %v660 = vmul.f32 %v412, %v412
    %v661 = vmul.f32 %v523, %v523
    %v662 = vmul.f32 %v525, %v525
    %v663 = vmul.f32 %v416, %v416
    %v664 = vmul.f32 %v418, %v418
    %v665 = vmul.f32 %v529, %v529
    %v666 = vmul.f32 %v531, %v531
    %v667 = vmul.f32 %v420, %v420
    %v668 = vmul.f32 %v422, %v422
    %v669 = vmul.f32 %v533, %v533
    %v670 = vmul.f32 %v535, %v535
    %v671 = vmul.f32 %v426, %v426
    %v672 = vmul.f32 %v428, %v428
    %v673 = vmul.f32 %v539, %v539
    %v674 = vmul.f32 %v541, %v541
    %v675 = vmul.f32 %v430, %v430
    %v676 = vmul.f32 %v432, %v432
    %v677 = vmul.f32 %v543, %v543
    %v678 = vmul.f32 %v545, %v545
    %v679 = vmul.f32 %v436, %v436
    %v680 = vmul.f32 %v438, %v438
    %v681 = vmul.f32 %v549, %v549
    %v682 = vmul.f32 %v551, %v551
    %v683 = vmul.f32 %v440, %v440
    %v684 = vmul.f32 %v442, %v442
    %v685 = vmul.f32 %v553, %v553
    %v686 = vmul.f32 %v555, %v555
    %v687 = vmul.f32 %v446, %v446
    %v688 = vmul.f32 %v448, %v448
    %v689 = vmul.f32 %v559, %v559
    %v690 = vmul.f32 %v561, %v561
    %v691 = vmul.f32 %v450, %v450
    %v692 = vmul.f32 %v452, %v452
    %v693 = vmul.f32 %v563, %v563
    %v694 = vmul.f32 %v565, %v565
    %v695 = vmul.f32 %v631, %v376
    %v696 = vmul.f32 %v632, %v378
    %v697 = vmul.f32 %v633, %v489
    %v698 = vmul.f32 %v634, %v491
    %v699 = vmul.f32 %v635, %v380
    %v700 = vmul.f32 %v636, %v382
    %v701 = vmul.f32 %v637, %v493
    %v702 = vmul.f32 %v638, %v495
    %v703 = vmul.f32 %v639, %v386
    %v704 = vmul.f32 %v640, %v388
    %v705 = vmul.f32 %v641, %v499
    %v706 = vmul.f32 %v642, %v501
    %v707 = vmul.f32 %v643, %v390
    %v708 = vmul.f32 %v644, %v392
    %v709 = vmul.f32 %v645, %v503
    %v710 = vmul.f32 %v646, %v505
    %v711 = vmul.f32 %v647, %v396
    %v712 = vmul.f32 %v648, %v398
    %v713 = vmul.f32 %v649, %v509
    %v714 = vmul.f32 %v650, %v511
    %v715 = vmul.f32 %v651, %v400
    %v716 = vmul.f32 %v652, %v402
    %v717 = vmul.f32 %v653, %v513
    %v718 = vmul.f32 %v654, %v515
    %v719 = vmul.f32 %v655, %v406
    %v720 = vmul.f32 %v656, %v408
    %v721 = vmul.f32 %v657, %v519
    %v722 = vmul.f32 %v658, %v521
    %v723 = vmul.f32 %v659, %v410
    %v724 = vmul.f32 %v660, %v412
    %v725 = vmul.f32 %v661, %v523
    %v726 = vmul.f32 %v662, %v525
    %v727 = vmul.f32 %v663, %v416
    %v728 = vmul.f32 %v664, %v418
    %v729 = vmul.f32 %v665, %v529
    %v730 = vmul.f32 %v666, %v531
    %v731 = vmul.f32 %v667, %v420
    %v732 = vmul.f32 %v668, %v422
    %v733 = vmul.f32 %v669, %v533
    %v734 = vmul.f32 %v670, %v535
    %v735 = vmul.f32 %v671, %v426
    %v736 = vmul.f32 %v672, %v428
    %v737 = vmul.f32 %v673, %v539
    %v738 = vmul.f32 %v674, %v541
    %v739 = vmul.f32 %v675, %v430
    %v740 = vmul.f32 %v676, %v432
    %v741 = vmul.f32 %v677, %v543
    %v742 = vmul.f32 %v678, %v545
    %v743 = vmul.f32 %v679, %v436
    %v744 = vmul.f32 %v680, %v438
    %v745 = vmul.f32 %v681, %v549
    %v746 = vmul.f32 %v682, %v551
    %v747 = vmul.f32 %v683, %v440
    %v748 = vmul.f32 %v684, %v442
    %v749 = vmul.f32 %v685, %v553
    %v750 = vmul.f32 %v686, %v555
    %v751 = vmul.f32 %v687, %v446
    %v752 = vmul.f32 %v688, %v448
    %v753 = vmul.f32 %v689, %v559
    %v754 = vmul.f32 %v690, %v561
    %v755 = vmul.f32 %v691, %v450
    %v756 = vmul.f32 %v692, %v452
    %v757 = vmul.f32 %v693, %v563
    %v758 = vmul.f32 %v694, %v565
    %v759 = vmul.f32 %v695, 0.044715
    %v760 = vmul.f32 %v696, 0.044715
    %v761 = vmul.f32 %v697, 0.044715
    %v762 = vmul.f32 %v698, 0.044715
    %v763 = vmul.f32 %v699, 0.044715
    %v764 = vmul.f32 %v700, 0.044715
    %v765 = vmul.f32 %v701, 0.044715
    %v766 = vmul.f32 %v702, 0.044715
    %v767 = vmul.f32 %v703, 0.044715
    %v768 = vmul.f32 %v704, 0.044715
    %v769 = vmul.f32 %v705, 0.044715
    %v770 = vmul.f32 %v706, 0.044715
    %v771 = vmul.f32 %v707, 0.044715
    %v772 = vmul.f32 %v708, 0.044715
    %v773 = vmul.f32 %v709, 0.044715
    %v774 = vmul.f32 %v710, 0.044715
    %v775 = vmul.f32 %v711, 0.044715
    %v776 = vmul.f32 %v712, 0.044715
    %v777 = vmul.f32 %v713, 0.044715
    %v778 = vmul.f32 %v714, 0.044715
    %v779 = vmul.f32 %v715, 0.044715
    %v780 = vmul.f32 %v716, 0.044715
    %v781 = vmul.f32 %v717, 0.044715
    %v782 = vmul.f32 %v718, 0.044715
    %v783 = vmul.f32 %v719, 0.044715
    %v784 = vmul.f32 %v720, 0.044715
    %v785 = vmul.f32 %v721, 0.044715
    %v786 = vmul.f32 %v722, 0.044715
    %v787 = vmul.f32 %v723, 0.044715
    %v788 = vmul.f32 %v724, 0.044715
    %v789 = vmul.f32 %v725, 0.044715
    %v790 = vmul.f32 %v726, 0.044715
    %v791 = vmul.f32 %v727, 0.044715
    %v792 = vmul.f32 %v728, 0.044715
    %v793 = vmul.f32 %v729, 0.044715
    %v794 = vmul.f32 %v730, 0.044715
    %v795 = vmul.f32 %v731, 0.044715
    %v796 = vmul.f32 %v732, 0.044715
    %v797 = vmul.f32 %v733, 0.044715
    %v798 = vmul.f32 %v734, 0.044715
    %v799 = vmul.f32 %v735, 0.044715
    %v800 = vmul.f32 %v736, 0.044715
    %v801 = vmul.f32 %v737, 0.044715
    %v802 = vmul.f32 %v738, 0.044715
    %v803 = vmul.f32 %v739, 0.044715
    %v804 = vmul.f32 %v740, 0.044715
    %v805 = vmul.f32 %v741, 0.044715
    %v806 = vmul.f32 %v742, 0.044715
    %v807 = vmul.f32 %v743, 0.044715
    %v808 = vmul.f32 %v744, 0.044715
    %v809 = vmul.f32 %v745, 0.044715
    %v810 = vmul.f32 %v746, 0.044715
    %v811 = vmul.f32 %v747, 0.044715
    %v812 = vmul.f32 %v748, 0.044715
    %v813 = vmul.f32 %v749, 0.044715
    %v814 = vmul.f32 %v750, 0.044715
    %v815 = vmul.f32 %v751, 0.044715
    %v816 = vmul.f32 %v752, 0.044715
    %v817 = vmul.f32 %v753, 0.044715
    %v818 = vmul.f32 %v754, 0.044715
    %v819 = vmul.f32 %v755, 0.044715
    %v820 = vmul.f32 %v756, 0.044715
    %v821 = vmul.f32 %v757, 0.044715
    %v822 = vmul.f32 %v758, 0.044715
    %v823 = vadd.f32 %v376, %v759
    %v824 = vadd.f32 %v378, %v760
    %v825 = vadd.f32 %v489, %v761
    %v826 = vadd.f32 %v491, %v762
    %v827 = vadd.f32 %v380, %v763
    %v828 = vadd.f32 %v382, %v764
    %v829 = vadd.f32 %v493, %v765
    %v830 = vadd.f32 %v495, %v766
    %v831 = vadd.f32 %v386, %v767
    %v832 = vadd.f32 %v388, %v768
    %v833 = vadd.f32 %v499, %v769
    %v834 = vadd.f32 %v501, %v770
    %v835 = vadd.f32 %v390, %v771
    %v836 = vadd.f32 %v392, %v772
    %v837 = vadd.f32 %v503, %v773
    %v838 = vadd.f32 %v505, %v774
    %v839 = vadd.f32 %v396, %v775
    %v840 = vadd.f32 %v398, %v776
    %v841 = vadd.f32 %v509, %v777
    %v842 = vadd.f32 %v511, %v778
    %v843 = vadd.f32 %v400, %v779
    %v844 = vadd.f32 %v402, %v780
    %v845 = vadd.f32 %v513, %v781
    %v846 = vadd.f32 %v515, %v782
    %v847 = vadd.f32 %v406, %v783
    %v848 = vadd.f32 %v408, %v784
    %v849 = vadd.f32 %v519, %v785
    %v850 = vadd.f32 %v521, %v786
    %v851 = vadd.f32 %v410, %v787
    %v852 = vadd.f32 %v412, %v788
    %v853 = vadd.f32 %v523, %v789
    %v854 = vadd.f32 %v525, %v790
    %v855 = vadd.f32 %v416, %v791
    %v856 = vadd.f32 %v418, %v792
    %v857 = vadd.f32 %v529, %v793
    %v858 = vadd.f32 %v531, %v794
    %v859 = vadd.f32 %v420, %v795
    %v860 = vadd.f32 %v422, %v796
    %v861 = vadd.f32 %v533, %v797
    %v862 = vadd.f32 %v535, %v798
    %v863 = vadd.f32 %v426, %v799
    %v864 = vadd.f32 %v428, %v800
    %v865 = vadd.f32 %v539, %v801
    %v866 = vadd.f32 %v541, %v802
    %v867 = vadd.f32 %v430, %v803
    %v868 = vadd.f32 %v432, %v804
    %v869 = vadd.f32 %v543, %v805
    %v870 = vadd.f32 %v545, %v806
    %v871 = vadd.f32 %v436, %v807
    %v872 = vadd.f32 %v438, %v808
    %v873 = vadd.f32 %v549, %v809
    %v874 = vadd.f32 %v551, %v810
    %v875 = vadd.f32 %v440, %v811
    %v876 = vadd.f32 %v442, %v812
    %v877 = vadd.f32 %v553, %v813
    %v878 = vadd.f32 %v555, %v814
    %v879 = vadd.f32 %v446, %v815
    %v880 = vadd.f32 %v448, %v816
    %v881 = vadd.f32 %v559, %v817
    %v882 = vadd.f32 %v561, %v818
    %v883 = vadd.f32 %v450, %v819
    %v884 = vadd.f32 %v452, %v820
    %v885 = vadd.f32 %v563, %v821
    %v886 = vadd.f32 %v565, %v822
    %v887 = vmul.f32 %v823, 0.7978846
    %v888 = vmul.f32 %v824, 0.7978846
    %v889 = vmul.f32 %v825, 0.7978846
    %v890 = vmul.f32 %v826, 0.7978846
    %v891 = vmul.f32 %v827, 0.7978846
    %v892 = vmul.f32 %v828, 0.7978846
    %v893 = vmul.f32 %v829, 0.7978846
    %v894 = vmul.f32 %v830, 0.7978846
    %v895 = vmul.f32 %v831, 0.7978846
    %v896 = vmul.f32 %v832, 0.7978846
    %v897 = vmul.f32 %v833, 0.7978846
    %v898 = vmul.f32 %v834, 0.7978846
    %v899 = vmul.f32 %v835, 0.7978846
    %v900 = vmul.f32 %v836, 0.7978846
    %v901 = vmul.f32 %v837, 0.7978846
    %v902 = vmul.f32 %v838, 0.7978846
    %v903 = vmul.f32 %v839, 0.7978846
    %v904 = vmul.f32 %v840, 0.7978846
    %v905 = vmul.f32 %v841, 0.7978846
    %v906 = vmul.f32 %v842, 0.7978846
    %v907 = vmul.f32 %v843, 0.7978846
    %v908 = vmul.f32 %v844, 0.7978846
    %v909 = vmul.f32 %v845, 0.7978846
    %v910 = vmul.f32 %v846, 0.7978846
    %v911 = vmul.f32 %v847, 0.7978846
    %v912 = vmul.f32 %v848, 0.7978846
    %v913 = vmul.f32 %v849, 0.7978846
    %v914 = vmul.f32 %v850, 0.7978846
    %v915 = vmul.f32 %v851, 0.7978846
    %v916 = vmul.f32 %v852, 0.7978846
    %v917 = vmul.f32 %v853, 0.7978846
    %v918 = vmul.f32 %v854, 0.7978846
    %v919 = vmul.f32 %v855, 0.7978846
    %v920 = vmul.f32 %v856, 0.7978846
    %v921 = vmul.f32 %v857, 0.7978846
    %v922 = vmul.f32 %v858, 0.7978846
    %v923 = vmul.f32 %v859, 0.7978846
    %v924 = vmul.f32 %v860, 0.7978846
    %v925 = vmul.f32 %v861, 0.7978846
    %v926 = vmul.f32 %v862, 0.7978846
    %v927 = vmul.f32 %v863, 0.7978846
    %v928 = vmul.f32 %v864, 0.7978846
    %v929 = vmul.f32 %v865, 0.7978846
    %v930 = vmul.f32 %v866, 0.7978846
    %v931 = vmul.f32 %v867, 0.7978846
    %v932 = vmul.f32 %v868, 0.7978846
    %v933 = vmul.f32 %v869, 0.7978846
    %v934 = vmul.f32 %v870, 0.7978846
    %v935 = vmul.f32 %v871, 0.7978846
    %v936 = vmul.f32 %v872, 0.7978846
    %v937 = vmul.f32 %v873, 0.7978846
    %v938 = vmul.f32 %v874, 0.7978846
    %v939 = vmul.f32 %v875, 0.7978846
    %v940 = vmul.f32 %v876, 0.7978846
    %v941 = vmul.f32 %v877, 0.7978846
    %v942 = vmul.f32 %v878, 0.7978846
    %v943 = vmul.f32 %v879, 0.7978846
    %v944 = vmul.f32 %v880, 0.7978846
    %v945 = vmul.f32 %v881, 0.7978846
    %v946 = vmul.f32 %v882, 0.7978846
    %v947 = vmul.f32 %v883, 0.7978846
    %v948 = vmul.f32 %v884, 0.7978846
    %v949 = vmul.f32 %v885, 0.7978846
    %v950 = vmul.f32 %v886, 0.7978846
    %v951 = vtanh.pop %v887
    %v952 = vtanh.pop %v888
    %v953 = vtanh.pop %v889
    %v954 = vtanh.pop %v890
    %v955 = vtanh.pop %v891
    %v956 = vtanh.pop %v892
    %v957 = vtanh.pop %v893
    %v958 = vtanh.pop %v894
    %v959 = vtanh.pop %v895
    %v960 = vtanh.pop %v896
    %v961 = vtanh.pop %v897
    %v962 = vtanh.pop %v898
    %v963 = vtanh.pop %v899
    %v964 = vtanh.pop %v900
    %v965 = vtanh.pop %v901
    %v966 = vtanh.pop %v902
    %v967 = vtanh.pop %v903
    %v968 = vtanh.pop %v904
    %v969 = vtanh.pop %v905
    %v970 = vtanh.pop %v906
    %v971 = vtanh.pop %v907
    %v972 = vtanh.pop %v908
    %v973 = vtanh.pop %v909
    %v974 = vtanh.pop %v910
    %v975 = vtanh.pop %v911
    %v976 = vtanh.pop %v912
    %v977 = vtanh.pop %v913
    %v978 = vtanh.pop %v914
    %v979 = vtanh.pop %v915
    %v980 = vtanh.pop %v916
    %v981 = vtanh.pop %v917
    %v982 = vtanh.pop %v918
    %v983 = vtanh.pop %v919
    %v984 = vtanh.pop %v920
    %v985 = vtanh.pop %v921
    %v986 = vtanh.pop %v922
    %v987 = vtanh.pop %v923
    %v988 = vtanh.pop %v924
    %v989 = vtanh.pop %v925
    %v990 = vtanh.pop %v926
    %v991 = vtanh.pop %v927
    %v992 = vtanh.pop %v928
    %v993 = vtanh.pop %v929
    %v994 = vtanh.pop %v930
    %v995 = vtanh.pop %v931
    %v996 = vtanh.pop %v932
    %v997 = vtanh.pop %v933
    %v998 = vtanh.pop %v934
    %v999 = vtanh.pop %v935
    %v1000 = vtanh.pop %v936
    %v1001 = vtanh.pop %v937
    %v1002 = vtanh.pop %v938
    %v1003 = vtanh.pop %v939
    %v1004 = vtanh.pop %v940
    %v1005 = vtanh.pop %v941
    %v1006 = vtanh.pop %v942
    %v1007 = vtanh.pop %v943
    %v1008 = vtanh.pop %v944
    %v1009 = vtanh.pop %v945
    %v1010 = vtanh.pop %v946
    %v1011 = vtanh.pop %v947
    %v1012 = vtanh.pop %v948
    %v1013 = vtanh.pop %v949
    %v1014 = vtanh.pop %v950
    %v1015 = vadd.f32 %v951, 1.0
    %v1016 = vadd.f32 %v952, 1.0
    %v1017 = vadd.f32 %v953, 1.0
    %v1018 = vadd.f32 %v954, 1.0
    %v1019 = vadd.f32 %v955, 1.0
    %v1020 = vadd.f32 %v956, 1.0
    %v1021 = vadd.f32 %v957, 1.0
    %v1022 = vadd.f32 %v958, 1.0
    %v1023 = vadd.f32 %v959, 1.0
    %v1024 = vadd.f32 %v960, 1.0
    %v1025 = vadd.f32 %v961, 1.0
    %v1026 = vadd.f32 %v962, 1.0
    %v1027 = vadd.f32 %v963, 1.0
    %v1028 = vadd.f32 %v964, 1.0
    %v1029 = vadd.f32 %v965, 1.0
    %v1030 = vadd.f32 %v966, 1.0
    %v1031 = vadd.f32 %v967, 1.0
    %v1032 = vadd.f32 %v968, 1.0
    %v1033 = vadd.f32 %v969, 1.0
    %v1034 = vadd.f32 %v970, 1.0
    %v1035 = vadd.f32 %v971, 1.0
    %v1036 = vadd.f32 %v972, 1.0
    %v1037 = vadd.f32 %v973, 1.0
    %v1038 = vadd.f32 %v974, 1.0
    %v1039 = vadd.f32 %v975, 1.0
    %v1040 = vadd.f32 %v976, 1.0
    %v1041 = vadd.f32 %v977, 1.0
    %v1042 = vadd.f32 %v978, 1.0
    %v1043 = vadd.f32 %v979, 1.0
    %v1044 = vadd.f32 %v980, 1.0
    %v1045 = vadd.f32 %v981, 1.0
    %v1046 = vadd.f32 %v982, 1.0
    %v1047 = vadd.f32 %v983, 1.0
    %v1048 = vadd.f32 %v984, 1.0
    %v1049 = vadd.f32 %v985, 1.0
    %v1050 = vadd.f32 %v986, 1.0
    %v1051 = vadd.f32 %v987, 1.0
    %v1052 = vadd.f32 %v988, 1.0
    %v1053 = vadd.f32 %v989, 1.0
    %v1054 = vadd.f32 %v990, 1.0
    %v1055 = vadd.f32 %v991, 1.0
    %v1056 = vadd.f32 %v992, 1.0
    %v1057 = vadd.f32 %v993, 1.0
    %v1058 = vadd.f32 %v994, 1.0
    %v1059 = vadd.f32 %v995, 1.0
    %v1060 = vadd.f32 %v996, 1.0
    %v1061 = vadd.f32 %v997, 1.0
    %v1062 = vadd.f32 %v998, 1.0
    %v1063 = vadd.f32 %v999, 1.0
    %v1064 = vadd.f32 %v1000, 1.0
    %v1065 = vadd.f32 %v1001, 1.0
    %v1066 = vadd.f32 %v1002, 1.0
    %v1067 = vadd.f32 %v1003, 1.0
    %v1068 = vadd.f32 %v1004, 1.0
    %v1069 = vadd.f32 %v1005, 1.0
    %v1070 = vadd.f32 %v1006, 1.0
    %v1071 = vadd.f32 %v1007, 1.0
    %v1072 = vadd.f32 %v1008, 1.0
    %v1073 = vadd.f32 %v1009, 1.0
    %v1074 = vadd.f32 %v1010, 1.0
    %v1075 = vadd.f32 %v1011, 1.0
    %v1076 = vadd.f32 %v1012, 1.0
    %v1077 = vadd.f32 %v1013, 1.0
    %v1078 = vadd.f32 %v1014, 1.0
    %v1079 = vmul.f32 %v567, %v1015
    %v1080 = vmul.f32 %v568, %v1016
    %v1081 = vmul.f32 %v569, %v1017
    %v1082 = vmul.f32 %v570, %v1018
    %v1083 = vmul.f32 %v571, %v1019
    %v1084 = vmul.f32 %v572, %v1020
    %v1085 = vmul.f32 %v573, %v1021
    %v1086 = vmul.f32 %v574, %v1022
    %v1087 = vmul.f32 %v575, %v1023
    %v1088 = vmul.f32 %v576, %v1024
    %v1089 = vmul.f32 %v577, %v1025
    %v1090 = vmul.f32 %v578, %v1026
    %v1091 = vmul.f32 %v579, %v1027
    %v1092 = vmul.f32 %v580, %v1028
    %v1093 = vmul.f32 %v581, %v1029
    %v1094 = vmul.f32 %v582, %v1030
    %v1095 = vmul.f32 %v583, %v1031
    %v1096 = vmul.f32 %v584, %v1032
    %v1097 = vmul.f32 %v585, %v1033
    %v1098 = vmul.f32 %v586, %v1034
    %v1099 = vmul.f32 %v587, %v1035
    %v1100 = vmul.f32 %v588, %v1036
    %v1101 = vmul.f32 %v589, %v1037
    %v1102 = vmul.f32 %v590, %v1038
    %v1103 = vmul.f32 %v591, %v1039
    %v1104 = vmul.f32 %v592, %v1040
    %v1105 = vmul.f32 %v593, %v1041
    %v1106 = vmul.f32 %v594, %v1042
    %v1107 = vmul.f32 %v595, %v1043
    %v1108 = vmul.f32 %v596, %v1044
    %v1109 = vmul.f32 %v597, %v1045
    %v1110 = vmul.f32 %v598, %v1046
    %v1111 = vmul.f32 %v599, %v1047
    %v1112 = vmul.f32 %v600, %v1048
    %v1113 = vmul.f32 %v601, %v1049
    %v1114 = vmul.f32 %v602, %v1050
    %v1115 = vmul.f32 %v603, %v1051
    %v1116 = vmul.f32 %v604, %v1052
    %v1117 = vmul.f32 %v605, %v1053
    %v1118 = vmul.f32 %v606, %v1054
    %v1119 = vmul.f32 %v607, %v1055
    %v1120 = vmul.f32 %v608, %v1056
    %v1121 = vmul.f32 %v609, %v1057
    %v1122 = vmul.f32 %v610, %v1058
    %v1123 = vmul.f32 %v611, %v1059
    %v1124 = vmul.f32 %v612, %v1060
    %v1125 = vmul.f32 %v613, %v1061
    %v1126 = vmul.f32 %v614, %v1062
    %v1127 = vmul.f32 %v615, %v1063
    %v1128 = vmul.f32 %v616, %v1064
    %v1129 = vmul.f32 %v617, %v1065
    %v1130 = vmul.f32 %v618, %v1066
    %v1131 = vmul.f32 %v619, %v1067
    %v1132 = vmul.f32 %v620, %v1068
    %v1133 = vmul.f32 %v621, %v1069
    %v1134 = vmul.f32 %v622, %v1070
    %v1135 = vmul.f32 %v623, %v1071
    %v1136 = vmul.f32 %v624, %v1072
    %v1137 = vmul.f32 %v625, %v1073
    %v1138 = vmul.f32 %v626, %v1074
    %v1139 = vmul.f32 %v627, %v1075
    %v1140 = vmul.f32 %v628, %v1076
    %v1141 = vmul.f32 %v629, %v1077
    %v1142 = vmul.f32 %v630, %v1078
    %v1143 = vpack.c.bf16 %v1083, %v1079
    %v1144 = vpack.c.bf16 %v1084, %v1080
    %v1145 = vpack.c.bf16 %v1085, %v1081
    %v1146 = vpack.c.bf16 %v1086, %v1082
    %v1147 = vpack.c.bf16 %v1091, %v1087
    %v1148 = vpack.c.bf16 %v1092, %v1088
    %v1149 = vpack.c.bf16 %v1093, %v1089
    %v1150 = vpack.c.bf16 %v1094, %v1090
    %v1151 = vpack.c.bf16 %v1099, %v1095
    %v1152 = vpack.c.bf16 %v1100, %v1096
    %v1153 = vpack.c.bf16 %v1101, %v1097
    %v1154 = vpack.c.bf16 %v1102, %v1098
    %v1155 = vpack.c.bf16 %v1107, %v1103
    %v1156 = vpack.c.bf16 %v1108, %v1104
    %v1157 = vpack.c.bf16 %v1109, %v1105
    %v1158 = vpack.c.bf16 %v1110, %v1106
    %v1159 = vpack.c.bf16 %v1115, %v1111
    %v1160 = vpack.c.bf16 %v1116, %v1112
    %v1161 = vpack.c.bf16 %v1117, %v1113
    %v1162 = vpack.c.bf16 %v1118, %v1114
    %v1163 = vpack.c.bf16 %v1123, %v1119
    %v1164 = vpack.c.bf16 %v1124, %v1120
    %v1165 = vpack.c.bf16 %v1125, %v1121
    %v1166 = vpack.c.bf16 %v1126, %v1122
    %v1167 = vpack.c.bf16 %v1131, %v1127
    %v1168 = vpack.c.bf16 %v1132, %v1128
    %v1169 = vpack.c.bf16 %v1133, %v1129
    %v1170 = vpack.c.bf16 %v1134, %v1130
    %v1171 = vpack.c.bf16 %v1139, %v1135
    %v1172 = vpack.c.bf16 %v1140, %v1136
    %v1173 = vpack.c.bf16 %v1141, %v1137
    %v1174 = vpack.c.bf16 %v1142, %v1138
    %v1175 = vld [vmem:[#allocation7] sm:$0xf]
    %v1176 = vld [vmem:[#allocation7 + $0x4] sm:$0xf]
    %v1177 = vld [vmem:[#allocation7 + $0x8] sm:$0xf]
    %v1178 = vld [vmem:[#allocation7 + $0xc] sm:$0xf]
    %v1179 = vld [vmem:[#allocation7 + $0x10] sm:$0xf]
    %v1180 = vld [vmem:[#allocation7 + $0x14] sm:$0xf]
    %v1181 = vld [vmem:[#allocation7 + $0x18] sm:$0xf]
    %v1182 = vld [vmem:[#allocation7 + $0x1c] sm:$0xf]
    %v1183 = vld [vmem:[#allocation7 + $0x20] sm:$0xf]
    %v1184 = vld [vmem:[#allocation7 + $0x24] sm:$0xf]
    %v1185 = vld [vmem:[#allocation7 + $0x28] sm:$0xf]
    %v1186 = vld [vmem:[#allocation7 + $0x2c] sm:$0xf]
    %v1187 = vld [vmem:[#allocation7 + $0x30] sm:$0xf]
    %v1188 = vld [vmem:[#allocation7 + $0x34] sm:$0xf]
    %v1189 = vld [vmem:[#allocation7 + $0x38] sm:$0xf]
    %v1190 = vld [vmem:[#allocation7 + $0x3c] sm:$0xf]
    %v1191 = vld [vmem:[#allocation7 + $0x40] sm:$0xf]
    %v1192 = vld [vmem:[#allocation7 + $0x44] sm:$0xf]
    %v1193 = vld [vmem:[#allocation7 + $0x48] sm:$0xf]
    %v1194 = vld [vmem:[#allocation7 + $0x4c] sm:$0xf]
    %v1195 = vld [vmem:[#allocation7 + $0x50] sm:$0xf]
    %v1196 = vld [vmem:[#allocation7 + $0x54] sm:$0xf]
    %v1197 = vld [vmem:[#allocation7 + $0x58] sm:$0xf]
    %v1198 = vld [vmem:[#allocation7 + $0x5c] sm:$0xf]
    %v1199 = vld [vmem:[#allocation7 + $0x60] sm:$0xf]
    %v1200 = vld [vmem:[#allocation7 + $0x64] sm:$0xf]
    %v1201 = vld [vmem:[#allocation7 + $0x68] sm:$0xf]
    %v1202 = vld [vmem:[#allocation7 + $0x6c] sm:$0xf]
    %v1203 = vld [vmem:[#allocation7 + $0x70] sm:$0xf]
    %v1204 = vld [vmem:[#allocation7 + $0x74] sm:$0xf]
    %v1205 = vld [vmem:[#allocation7 + $0x78] sm:$0xf]
    %v1206 = vld [vmem:[#allocation7 + $0x7c] sm:$0xf]
    %v1207 = vld [vmem:[#allocation7 + $0x80] sm:$0xf]
    %v1208 = vld [vmem:[#allocation7 + $0x84] sm:$0xf]
    %v1209 = vld [vmem:[#allocation7 + $0x88] sm:$0xf]
    %v1210 = vld [vmem:[#allocation7 + $0x8c] sm:$0xf]
    %v1211 = vld [vmem:[#allocation7 + $0x90] sm:$0xf]
    %v1212 = vld [vmem:[#allocation7 + $0x94] sm:$0xf]
    %v1213 = vld [vmem:[#allocation7 + $0x98] sm:$0xf]
    %v1214 = vld [vmem:[#allocation7 + $0x9c] sm:$0xf]
    %v1215 = vld [vmem:[#allocation7 + $0xa0] sm:$0xf]
    %v1216 = vld [vmem:[#allocation7 + $0xa4] sm:$0xf]
    %v1217 = vld [vmem:[#allocation7 + $0xa8] sm:$0xf]
    %v1218 = vld [vmem:[#allocation7 + $0xac] sm:$0xf]
    %v1219 = vld [vmem:[#allocation7 + $0xb0] sm:$0xf]
    %v1220 = vld [vmem:[#allocation7 + $0xb4] sm:$0xf]
    %v1221 = vld [vmem:[#allocation7 + $0xb8] sm:$0xf]
    %v1222 = vld [vmem:[#allocation7 + $0xbc] sm:$0xf]
    %v1223 = vld [vmem:[#allocation7 + $0xc0] sm:$0xf]
    %v1224 = vld [vmem:[#allocation7 + $0xc4] sm:$0xf]
    %v1225 = vld [vmem:[#allocation7 + $0xc8] sm:$0xf]
    %v1226 = vld [vmem:[#allocation7 + $0xcc] sm:$0xf]
    %v1227 = vld [vmem:[#allocation7 + $0xd0] sm:$0xf]
    %v1228 = vld [vmem:[#allocation7 + $0xd4] sm:$0xf]
    %v1229 = vld [vmem:[#allocation7 + $0xd8] sm:$0xf]
    %v1230 = vld [vmem:[#allocation7 + $0xdc] sm:$0xf]
    %v1231 = vld [vmem:[#allocation7 + $0xe0] sm:$0xf]
    %v1232 = vld [vmem:[#allocation7 + $0xe4] sm:$0xf]
    %v1233 = vld [vmem:[#allocation7 + $0xe8] sm:$0xf]
    %v1234 = vld [vmem:[#allocation7 + $0xec] sm:$0xf]
    %v1235 = vld [vmem:[#allocation7 + $0xf0] sm:$0xf]
    %v1236 = vld [vmem:[#allocation7 + $0xf4] sm:$0xf]
    %v1237 = vld [vmem:[#allocation7 + $0xf8] sm:$0xf]
    %v1238 = vld [vmem:[#allocation7 + $0xfc] sm:$0xf]
    %v1239 = vld [vmem:[%s4] sm:$0x1]
    %v1241 = vlaneseq
    %v1242 = vshrl.u32 %v1241, 7
    %v1243 = vsub.s32 0, %v1242
    %v1244 = vrot.slane %v1239, %v1243
    %v1310 = vunpack.c.l.b16 %v1175
    %v1311 = vunpack.c.l.b16 %v1176
    %v1312 = vunpack.c.l.b16 %v1177
    %v1313 = vunpack.c.l.b16 %v1178
    %v1314 = vunpack.c.l.b16 %v1179
    %v1315 = vunpack.c.l.b16 %v1180
    %v1316 = vunpack.c.l.b16 %v1181
    %v1317 = vunpack.c.l.b16 %v1182
    %v1318 = vunpack.c.l.b16 %v1183
    %v1319 = vunpack.c.l.b16 %v1184
    %v1320 = vunpack.c.l.b16 %v1185
    %v1321 = vunpack.c.l.b16 %v1186
    %v1322 = vunpack.c.l.b16 %v1187
    %v1323 = vunpack.c.l.b16 %v1188
    %v1324 = vunpack.c.l.b16 %v1189
    %v1325 = vunpack.c.l.b16 %v1190
    %v1326 = vunpack.c.l.b16 %v1191
    %v1327 = vunpack.c.l.b16 %v1192
    %v1328 = vunpack.c.l.b16 %v1193
    %v1329 = vunpack.c.l.b16 %v1194
    %v1330 = vunpack.c.l.b16 %v1195
    %v1331 = vunpack.c.l.b16 %v1196
    %v1332 = vunpack.c.l.b16 %v1197
    %v1333 = vunpack.c.l.b16 %v1198
    %v1334 = vunpack.c.l.b16 %v1199
    %v1335 = vunpack.c.l.b16 %v1200
    %v1336 = vunpack.c.l.b16 %v1201
    %v1337 = vunpack.c.l.b16 %v1202
    %v1338 = vunpack.c.l.b16 %v1203
    %v1339 = vunpack.c.l.b16 %v1204
    %v1340 = vunpack.c.l.b16 %v1205
    %v1341 = vunpack.c.l.b16 %v1206
    %v1342 = vunpack.c.l.b16 %v1207
    %v1343 = vunpack.c.l.b16 %v1208
    %v1344 = vunpack.c.l.b16 %v1209
    %v1345 = vunpack.c.l.b16 %v1210
    %v1346 = vunpack.c.l.b16 %v1211
    %v1347 = vunpack.c.l.b16 %v1212
    %v1348 = vunpack.c.l.b16 %v1213
    %v1349 = vunpack.c.l.b16 %v1214
    %v1350 = vunpack.c.l.b16 %v1215
    %v1351 = vunpack.c.l.b16 %v1216
    %v1352 = vunpack.c.l.b16 %v1217
    %v1353 = vunpack.c.l.b16 %v1218
    %v1354 = vunpack.c.l.b16 %v1219
    %v1355 = vunpack.c.l.b16 %v1220
    %v1356 = vunpack.c.l.b16 %v1221
    %v1357 = vunpack.c.l.b16 %v1222
    %v1358 = vunpack.c.l.b16 %v1223
    %v1359 = vunpack.c.l.b16 %v1224
    %v1360 = vunpack.c.l.b16 %v1225
    %v1361 = vunpack.c.l.b16 %v1226
    %v1362 = vunpack.c.l.b16 %v1227
    %v1363 = vunpack.c.l.b16 %v1228
    %v1364 = vunpack.c.l.b16 %v1229
    %v1365 = vunpack.c.l.b16 %v1230
    %v1366 = vunpack.c.l.b16 %v1231
    %v1367 = vunpack.c.l.b16 %v1232
    %v1368 = vunpack.c.l.b16 %v1233
    %v1369 = vunpack.c.l.b16 %v1234
    %v1370 = vunpack.c.l.b16 %v1235
    %v1371 = vunpack.c.l.b16 %v1236
    %v1372 = vunpack.c.l.b16 %v1237
    %v1373 = vunpack.c.l.b16 %v1238
    %v1374 = vpack.c.b16 %v1311, %v1310
    %v1375 = vpack.c.b16 %v1313, %v1312
    %v1376 = vpack.c.b16 %v1315, %v1314
    %v1377 = vpack.c.b16 %v1317, %v1316
    %v1378 = vpack.c.b16 %v1319, %v1318
    %v1379 = vpack.c.b16 %v1321, %v1320
    %v1380 = vpack.c.b16 %v1323, %v1322
    %v1381 = vpack.c.b16 %v1325, %v1324
    %v1382 = vpack.c.b16 %v1327, %v1326
    %v1383 = vpack.c.b16 %v1329, %v1328
    %v1384 = vpack.c.b16 %v1331, %v1330
    %v1385 = vpack.c.b16 %v1333, %v1332
    %v1386 = vpack.c.b16 %v1335, %v1334
    %v1387 = vpack.c.b16 %v1337, %v1336
    %v1388 = vpack.c.b16 %v1339, %v1338
    %v1389 = vpack.c.b16 %v1341, %v1340
    %v1390 = vpack.c.b16 %v1343, %v1342
    %v1391 = vpack.c.b16 %v1345, %v1344
    %v1392 = vpack.c.b16 %v1347, %v1346
    %v1393 = vpack.c.b16 %v1349, %v1348
    %v1394 = vpack.c.b16 %v1351, %v1350
    %v1395 = vpack.c.b16 %v1353, %v1352
    %v1396 = vpack.c.b16 %v1355, %v1354
    %v1397 = vpack.c.b16 %v1357, %v1356
    %v1398 = vpack.c.b16 %v1359, %v1358
    %v1399 = vpack.c.b16 %v1361, %v1360
    %v1400 = vpack.c.b16 %v1363, %v1362
    %v1401 = vpack.c.b16 %v1365, %v1364
    %v1402 = vpack.c.b16 %v1367, %v1366
    %v1403 = vpack.c.b16 %v1369, %v1368
    %v1404 = vpack.c.b16 %v1371, %v1370
    %v1405 = vpack.c.b16 %v1373, %v1372
    %1438 = vmatprep.subr.bf16.mxu0 0
    %1439 = vmatpush1.bf16.msra.mxu0 %v1374
    %1440 = vmatprep.subr.bf16.mxu0 0
    %1441 = vmatpush1.bf16.msra.mxu0 %v1375
    %1442 = vmatprep.subr.bf16.mxu0 0
    %1443 = vmatpush1.bf16.msra.mxu0 %v1376
    %1444 = vmatprep.subr.bf16.mxu0 0
    %1445 = vmatpush1.bf16.msra.mxu0 %v1377
    %1446 = vmatprep.subr.bf16.mxu0 0
    %1447 = vmatpush1.bf16.msra.mxu0 %v1378
    %1448 = vmatprep.subr.bf16.mxu0 0
    %1449 = vmatpush1.bf16.msra.mxu0 %v1379
    %1450 = vmatprep.subr.bf16.mxu0 0
    %1451 = vmatpush1.bf16.msra.mxu0 %v1380
    %1452 = vmatprep.subr.bf16.mxu0 0
    %1453 = vmatpush1.bf16.msra.mxu0 %v1381
    %1454 = vmatprep.subr.bf16.mxu0 0
    %1455 = vmatpush1.bf16.msra.mxu0 %v1382
    %1456 = vmatprep.subr.bf16.mxu0 0
    %1457 = vmatpush1.bf16.msra.mxu0 %v1383
    %1458 = vmatprep.subr.bf16.mxu0 0
    %1459 = vmatpush1.bf16.msra.mxu0 %v1384
    %1460 = vmatprep.subr.bf16.mxu0 0
    %1461 = vmatpush1.bf16.msra.mxu0 %v1385
    %1462 = vmatprep.subr.bf16.mxu0 0
    %1463 = vmatpush1.bf16.msra.mxu0 %v1386
    %1464 = vmatprep.subr.bf16.mxu0 0
    %1465 = vmatpush1.bf16.msra.mxu0 %v1387
    %1466 = vmatprep.subr.bf16.mxu0 0
    %1467 = vmatpush1.bf16.msra.mxu0 %v1388
    %1468 = vmatprep.subr.bf16.mxu0 0
    %1469 = vmatpush1.bf16.msra.mxu0 %v1389
    %1470 = vmatprep.mubr.bf16.mxu0 %v1144
    %1471 = vmatmul.mubr.bf16.gmra.mrb[0].mxu0 %v1143
    %v1472 = vpop.f32.mrb[0].mxu0
    %v1473 = vadd.f32 %v1244, %v1472
    %v1474 = vpop.f32.mrb[0].mxu0
    %v1475 = vpop.f32.mrb[0].mxu0
    %v1476 = vadd.f32 %v1244, %v1475
    %v1477 = vpop.f32.mrb[0].mxu0
    %1478 = vmatprep.mubr.bf16.mxu0 %v1148
    %1479 = vmatmul.mubr.bf16.gmra.mrb[0].mxu0 %v1147
    %v1480 = vpop.f32.mrb[0].mxu0
    %v1481 = vadd.f32 %v1244, %v1480
    %v1482 = vpop.f32.mrb[0].mxu0
    %v1483 = vpop.f32.mrb[0].mxu0
    %v1484 = vadd.f32 %v1244, %v1483
    %v1485 = vpop.f32.mrb[0].mxu0
    %1486 = vmatprep.mubr.bf16.mxu0 %v1152
    %1487 = vmatmul.mubr.bf16.gmra.mrb[0].mxu0 %v1151
    %v1488 = vpop.f32.mrb[0].mxu0
    %v1489 = vadd.f32 %v1244, %v1488
    %v1490 = vpop.f32.mrb[0].mxu0
    %v1491 = vpop.f32.mrb[0].mxu0
    %v1492 = vadd.f32 %v1244, %v1491
    %v1493 = vpop.f32.mrb[0].mxu0
    %1494 = vmatprep.mubr.bf16.mxu0 %v1156
    %1495 = vmatmul.mubr.bf16.gmra.mrb[0].mxu0 %v1155
    %v1496 = vpop.f32.mrb[0].mxu0
    %v1497 = vadd.f32 %v1244, %v1496
    %v1498 = vpop.f32.mrb[0].mxu0
    %v1499 = vpop.f32.mrb[0].mxu0
    %v1500 = vadd.f32 %v1244, %v1499
    %v1501 = vpop.f32.mrb[0].mxu0
    %1502 = vmatprep.mubr.bf16.mxu0 %v1160
    %1503 = vmatmul.mubr.bf16.gmra.mrb[0].mxu0 %v1159
    %v1504 = vpop.f32.mrb[0].mxu0
    %v1505 = vadd.f32 %v1244, %v1504
    %v1506 = vpop.f32.mrb[0].mxu0
    %v1507 = vpop.f32.mrb[0].mxu0
    %v1508 = vadd.f32 %v1244, %v1507
    %v1509 = vpop.f32.mrb[0].mxu0
    %1510 = vmatprep.mubr.bf16.mxu0 %v1164
    %1511 = vmatmul.mubr.bf16.gmra.mrb[0].mxu0 %v1163
    %v1512 = vpop.f32.mrb[0].mxu0
    %v1513 = vadd.f32 %v1244, %v1512
    %v1514 = vpop.f32.mrb[0].mxu0
    %v1515 = vpop.f32.mrb[0].mxu0
    %v1516 = vadd.f32 %v1244, %v1515
    %v1517 = vpop.f32.mrb[0].mxu0
    %1518 = vmatprep.mubr.bf16.mxu0 %v1168
    %1519 = vmatmul.mubr.bf16.gmra.mrb[0].mxu0 %v1167
    %v1520 = vpop.f32.mrb[0].mxu0
    %v1521 = vadd.f32 %v1244, %v1520
    %v1522 = vpop.f32.mrb[0].mxu0
    %v1523 = vpop.f32.mrb[0].mxu0
    %v1524 = vadd.f32 %v1244, %v1523
    %v1525 = vpop.f32.mrb[0].mxu0
    %1526 = vmatprep.mubr.bf16.mxu0 %v1172
    %1527 = vmatmul.mubr.bf16.gmra.mrb[0].mxu0 %v1171
    %v1528 = vpop.f32.mrb[0].mxu0
    %v1529 = vadd.f32 %v1244, %v1528
    %v1530 = vpop.f32.mrb[0].mxu0
    %v1531 = vpop.f32.mrb[0].mxu0
    %v1532 = vadd.f32 %v1244, %v1531
    %v1533 = vpop.f32.mrb[0].mxu0
    %1534 = vdwg.mxu0
    %1535 = vmatprep.subr.bf16.mxu0 0
    %1536 = vmatpush1.bf16.msra.mxu0 %v1390
    %1537 = vmatprep.subr.bf16.mxu0 0
    %1538 = vmatpush1.bf16.msra.mxu0 %v1391
    %1539 = vmatprep.subr.bf16.mxu0 0
    %1540 = vmatpush1.bf16.msra.mxu0 %v1392
    %1541 = vmatprep.subr.bf16.mxu0 0
    %1542 = vmatpush1.bf16.msra.mxu0 %v1393
    %1543 = vmatprep.subr.bf16.mxu0 0
    %1544 = vmatpush1.bf16.msra.mxu0 %v1394
    %1545 = vmatprep.subr.bf16.mxu0 0
    %1546 = vmatpush1.bf16.msra.mxu0 %v1395
    %1547 = vmatprep.subr.bf16.mxu0 0
    %1548 = vmatpush1.bf16.msra.mxu0 %v1396
    %1549 = vmatprep.subr.bf16.mxu0 0
    %1550 = vmatpush1.bf16.msra.mxu0 %v1397
    %1551 = vmatprep.subr.bf16.mxu0 0
    %1552 = vmatpush1.bf16.msra.mxu0 %v1398
    %1553 = vmatprep.subr.bf16.mxu0 0
    %1554 = vmatpush1.bf16.msra.mxu0 %v1399
    %1555 = vmatprep.subr.bf16.mxu0 0
    %1556 = vmatpush1.bf16.msra.mxu0 %v1400
    %1557 = vmatprep.subr.bf16.mxu0 0
    %1558 = vmatpush1.bf16.msra.mxu0 %v1401
    %1559 = vmatprep.subr.bf16.mxu0 0
    %1560 = vmatpush1.bf16.msra.mxu0 %v1402
    %1561 = vmatprep.subr.bf16.mxu0 0
    %1562 = vmatpush1.bf16.msra.mxu0 %v1403
    %1563 = vmatprep.subr.bf16.mxu0 0
    %1564 = vmatpush1.bf16.msra.mxu0 %v1404
    %1565 = vmatprep.subr.bf16.mxu0 0
    %1566 = vmatpush1.bf16.msra.mxu0 %v1405
    %1567 = vmatprep.mubr.bf16.mxu0 %v1146
    %1568 = vmatmul.mubr.bf16.gmra.mrb[0].mxu0 %v1145
    %v1569 = vpop.f32.mrb[0].mxu0
    %v1570 = vadd.f32 %v1473, %v1569
    %v1571 = vpop.f32.mrb[0].mxu0
    %v1572 = vpop.f32.mrb[0].mxu0
    %v1573 = vadd.f32 %v1476, %v1572
    %v1574 = vpop.f32.mrb[0].mxu0
    %1575 = vmatprep.mubr.bf16.mxu0 %v1150
    %1576 = vmatmul.mubr.bf16.gmra.mrb[0].mxu0 %v1149
    %v1577 = vpop.f32.mrb[0].mxu0
    %v1578 = vadd.f32 %v1481, %v1577
    %v1579 = vpop.f32.mrb[0].mxu0
    %v1580 = vpop.f32.mrb[0].mxu0
    %v1581 = vadd.f32 %v1484, %v1580
    %v1582 = vpop.f32.mrb[0].mxu0
    %1583 = vmatprep.mubr.bf16.mxu0 %v1154
    %1584 = vmatmul.mubr.bf16.gmra.mrb[0].mxu0 %v1153
    %v1585 = vpop.f32.mrb[0].mxu0
    %v1586 = vadd.f32 %v1489, %v1585
    %v1587 = vpop.f32.mrb[0].mxu0
    %v1588 = vpop.f32.mrb[0].mxu0
    %v1589 = vadd.f32 %v1492, %v1588
    %v1590 = vpop.f32.mrb[0].mxu0
    %1591 = vmatprep.mubr.bf16.mxu0 %v1158
    %1592 = vmatmul.mubr.bf16.gmra.mrb[0].mxu0 %v1157
    %v1593 = vpop.f32.mrb[0].mxu0
    %v1594 = vadd.f32 %v1497, %v1593
    %v1595 = vpop.f32.mrb[0].mxu0
    %v1596 = vpop.f32.mrb[0].mxu0
    %v1597 = vadd.f32 %v1500, %v1596
    %v1598 = vpop.f32.mrb[0].mxu0
    %1599 = vmatprep.mubr.bf16.mxu0 %v1162
    %1600 = vmatmul.mubr.bf16.gmra.mrb[0].mxu0 %v1161
    %v1601 = vpop.f32.mrb[0].mxu0
    %v1602 = vadd.f32 %v1505, %v1601
    %v1603 = vpop.f32.mrb[0].mxu0
    %v1604 = vpop.f32.mrb[0].mxu0
    %v1605 = vadd.f32 %v1508, %v1604
    %v1606 = vpop.f32.mrb[0].mxu0
    %1607 = vmatprep.mubr.bf16.mxu0 %v1166
    %1608 = vmatmul.mubr.bf16.gmra.mrb[0].mxu0 %v1165
    %v1609 = vpop.f32.mrb[0].mxu0
    %v1610 = vadd.f32 %v1513, %v1609
    %v1611 = vpop.f32.mrb[0].mxu0
    %v1612 = vpop.f32.mrb[0].mxu0
    %v1613 = vadd.f32 %v1516, %v1612
    %v1614 = vpop.f32.mrb[0].mxu0
    %1615 = vmatprep.mubr.bf16.mxu0 %v1170
    %1616 = vmatmul.mubr.bf16.gmra.mrb[0].mxu0 %v1169
    %v1617 = vpop.f32.mrb[0].mxu0
    %v1618 = vadd.f32 %v1521, %v1617
    %v1619 = vpop.f32.mrb[0].mxu0
    %v1620 = vpop.f32.mrb[0].mxu0
    %v1621 = vadd.f32 %v1524, %v1620
    %v1622 = vpop.f32.mrb[0].mxu0
    %1623 = vmatprep.mubr.bf16.mxu0 %v1174
    %1624 = vmatmul.mubr.bf16.gmra.mrb[0].mxu0 %v1173
    %v1625 = vpop.f32.mrb[0].mxu0
    %v1626 = vadd.f32 %v1529, %v1625
    %v1627 = vpop.f32.mrb[0].mxu0
    %v1628 = vpop.f32.mrb[0].mxu0
    %v1629 = vadd.f32 %v1532, %v1628
    %v1630 = vpop.f32.mrb[0].mxu0
    %1631 = vdwg.mxu0
    %1632 = vst [vmem:[#allocation8] sm:$0xff] %v1570
    %1633 = vst [vmem:[#allocation8 + $0x8] sm:$0xff] %v1573
    %1634 = vst [vmem:[#allocation8 + $0x10] sm:$0xff] %v1578
    %1635 = vst [vmem:[#allocation8 + $0x18] sm:$0xff] %v1581
    %1636 = vst [vmem:[#allocation8 + $0x20] sm:$0xff] %v1586
    %1637 = vst [vmem:[#allocation8 + $0x28] sm:$0xff] %v1589
    %1638 = vst [vmem:[#allocation8 + $0x30] sm:$0xff] %v1594
    %1639 = vst [vmem:[#allocation8 + $0x38] sm:$0xff] %v1597
    %1640 = vst [vmem:[#allocation8 + $0x40] sm:$0xff] %v1602
    %1641 = vst [vmem:[#allocation8 + $0x48] sm:$0xff] %v1605
    %1642 = vst [vmem:[#allocation8 + $0x50] sm:$0xff] %v1610
    %1643 = vst [vmem:[#allocation8 + $0x58] sm:$0xff] %v1613
    %1644 = vst [vmem:[#allocation8 + $0x60] sm:$0xff] %v1618
    %1645 = vst [vmem:[#allocation8 + $0x68] sm:$0xff] %v1621
    %1646 = vst [vmem:[#allocation8 + $0x70] sm:$0xff] %v1626
    %1647 = vst [vmem:[#allocation8 + $0x78] sm:$0xff] %v1629
    // Predicated region
    $region34: #{tpu_custom_call.1} parent=1 // pred_check
      _
    $region35: #{tpu_custom_call.1} parent=1 // pred_check_branch
      %1649 = sbr.rel (0) target = $region37
    $region36: #{tpu_custom_call.1} parent=1 // pred_region
      %s1651 = ssub.s32 2048, 2048
      %1652 = vsyncadd [#allocation4], %s1651
      %s1653 = sshll.u32 [#allocation8], 4
      %s1654 = int_to_ptr.vmem [resolvable:$true] %s1653
      %1659 = dma.vmem_to_hbm [thread:$0]  %s1654, 2048, %s5, [#allocation4], 128, 128, 8
    $region37: #{tpu_custom_call.1} parent=1 // pred_fallthru
      _
    // Predicated region
    $region38: #{tpu_custom_call.1} parent=1 // pred_check
      _
    $region39: #{tpu_custom_call.1} parent=1 // pred_check_branch
      %1661 = sbr.rel (0) target = $region41
    $region40: #{tpu_custom_call.1} parent=1 // pred_region
      %1662 = dma.done [#allocation4], 2048
    $region41: #{tpu_custom_call.1} parent=1 // pred_fallthru
      _
    %1663 = vsyncpa [#allocation3], 1
    %1664 = vsyncpa [#allocation6], 1
    %1665 = vsyncpa [#allocation4], 1

</llo_original>
